<compile_context>
chip_gen: v7x
topology: tpu7x:2x2x1
jax: 0.10.0
libtpu: 0.0.40
codegen_flags: <defaults>
</compile_context>

<pallas_src>
import functools

import jax
import jax.numpy as jnp
from jax.experimental import pallas as pl
from jax.experimental.pallas import tpu as pltpu

N_BACKBONE = 8
HEAD_PAD = 128  # lane padding for the fused head outputs / final store


def layer_dims(hidden_dim: int, n_actions: int):
    backbone = [(hidden_dim, 32), (32, 64), (64, 128), (128, 256),
                (256, 512), (512, 256), (256, 64), (64, 64)]
    value_head = [(64, 64), (64, 1)]
    advantage_head = [(64, 64), (64, n_actions)]
    return backbone + value_head + advantage_head


def init_params(key, hidden_dim: int, n_actions: int):
    """PyTorch-style init U(-1/sqrt(fan_in), 1/sqrt(fan_in)); W stored (in, out)."""
    params = []
    for i, (fan_in, fan_out) in enumerate(layer_dims(hidden_dim, n_actions)):
        kw, kb = jax.random.split(jax.random.fold_in(key, i))
        bound = 1.0 / jnp.sqrt(jnp.float32(fan_in))
        w = jax.random.uniform(kw, (fan_in, fan_out), jnp.float32, -bound, bound)
        b = jax.random.uniform(kb, (fan_out,), jnp.float32, -bound, bound)
        params.append((w, b))
    return params


def pack_params(params, n_actions: int):
    """One-time host-side packing into fused bf16 weight slabs + one f32 bias slab.

    The dueling combine (v + a - mean(a)) is folded into head2 here (exact
    algebraic fold, the combine is linear in the head outputs).
    """
    assert n_actions <= HEAD_PAD, "fused head packing assumes n_actions <= 128"
    ws = [w for (w, _) in params]
    bs = [b for (_, b) in params]
    f32, bf16 = jnp.float32, jnp.bfloat16

    def pad_cols(w, to):
        return jnp.pad(w, ((0, 0), (0, to - w.shape[1])))

    # Fused head-first weight: [value_hidden (64) | advantage_hidden (64)] -> (64, 128)
    head1_w = jnp.concatenate([ws[8], ws[10]], axis=1)            # (64, 128)
    head1_b = jnp.concatenate([bs[8], bs[10]], axis=0)            # (128,)

    # Fused head-second weight with the dueling combine folded in:
    #   q_j = h_v @ Wv2 + bv2 + h_a @ (Wa2[:,j] - mean_k Wa2[:,k])
    #         + (ba2[j] - mean_k ba2[k])
    wv2, bv2 = ws[9], bs[9]                                       # (64,1), (1,)
    wa2, ba2 = ws[11], bs[11]                                     # (64,A), (A,)
    wa2_c = wa2 - jnp.mean(wa2, axis=1, keepdims=True)
    ba2_c = ba2 - jnp.mean(ba2)
    head2_w = jnp.zeros((128, HEAD_PAD), f32)
    head2_w = head2_w.at[0:64, 0:n_actions].set(jnp.broadcast_to(wv2, (64, n_actions)))
    head2_w = head2_w.at[64:128, 0:n_actions].set(wa2_c)
    head2_b = jnp.zeros((HEAD_PAD,), f32)
    head2_b = head2_b.at[0:n_actions].set(bv2[0] + ba2_c)

    # Weight slabs, grouped by input dim, constituents lane-padded to 128-aligned offsets.
    wA = ws[0].astype(bf16)                                                            # (1024, 32)
    wB = ws[1].astype(bf16)                                                            # (32, 64)
    wC = jnp.concatenate([ws[2], pad_cols(ws[7], 128), head1_w], axis=1).astype(bf16)  # (64, 384)
    wD = jnp.concatenate([ws[3], head2_w], axis=1).astype(bf16)                        # (128, 384)
    wE = jnp.concatenate([ws[4], pad_cols(ws[6], 128)], axis=1).astype(bf16)           # (256, 640)
    wF = ws[5].astype(bf16)                                                            # (512, 256)

    # Single f32 bias slab: row i holds layer i's bias, zero-padded to 512 lanes.
    bias = jnp.zeros((16, 512), f32)
    widths = [32, 64, 128, 256, 512, 256, 64, 64]
    for i in range(N_BACKBONE):
        bias = bias.at[i, :widths[i]].set(bs[i])
    bias = bias.at[8, :128].set(head1_b)
    bias = bias.at[9, :HEAD_PAD].set(head2_b)

    return dict(wA=wA, wB=wB, wC=wC, wD=wD, wE=wE, wF=wF, bias=bias)


def dueling_dqn_kernel(x_ref, wA_ref, wB_ref, wC_ref, wD_ref, wE_ref, wF_ref,
                       b_ref, out_ref):
    f32, bf16 = jnp.float32, jnp.bfloat16

    def dense(h, w, bias_row, width, relu=True):
        y = jnp.dot(h.astype(bf16), w, preferred_element_type=f32)   # MXU, f32 acc
        y = y + b_ref[bias_row:bias_row + 1, 0:width]                # f32 bias add (VPU)
        return jnp.maximum(y, 0.0) if relu else y

    h = x_ref[...]                                               # (TB, 1024) bf16
    # Backbone (Dropout1d(p=0) layers are identity).
    h = dense(h, wA_ref[...], 0, 32)                             # 1024 -> 32
    h = dense(h, wB_ref[...], 1, 64)                             # 32   -> 64
    h = dense(h, wC_ref[:, 0:128], 2, 128)                       # 64   -> 128
    h = dense(h, wD_ref[:, 0:256], 3, 256)                       # 128  -> 256
    h = dense(h, wE_ref[:, 0:512], 4, 512)                       # 256  -> 512
    h = dense(h, wF_ref[...], 5, 256)                            # 512  -> 256
    h = dense(h, wE_ref[:, 512:576], 6, 64)                      # 256  -> 64
    h = dense(h, wC_ref[:, 128:192], 7, 64)                      # 64   -> 64

    # Fused dueling heads; the combine v + a - mean(a) is folded into the
    # packed head2 weights/bias, so the final matmul result IS q (lane-dense
    # (TB, 128) store; q lives in lanes 0 .. n_actions-1, sliced in wrapper).
    h1 = dense(h, wC_ref[:, 256:384], 8, 128)                    # 64 -> 128  (value||adv hidden)
    out_ref[...] = dense(h1, wD_ref[:, 256:384], 9, HEAD_PAD, relu=False)


@functools.partial(jax.jit, static_argnames=("out_shape",))
def dueling_dqn_forward(x, packed, out_shape: int):
    batch = x.shape[0]
    n_actions = int(out_shape)
    x_flat = x.reshape(batch, -1).astype(jnp.bfloat16)           # nn.Flatten(), bf16 input
    in_dim = x_flat.shape[1]

    # Batch tile: multiple of 16 sublanes (unmasked bf16 loads), capped at 128 rows.
    tb = min(128, ((batch + 15) // 16) * 16)
    padded = ((batch + tb - 1) // tb) * tb
    if padded != batch:
        x_flat = jnp.pad(x_flat, ((0, padded - batch), (0, 0)))
    grid = (padded // tb,)

    def resident(arr):
        # Full-size block, constant index_map: DMA'd once, VMEM-resident across grid steps.
        return pl.BlockSpec(arr.shape, lambda i: (0, 0))

    q_full = pl.pallas_call(
        dueling_dqn_kernel,
        out_shape=jax.ShapeDtypeStruct((padded, HEAD_PAD), jnp.float32),
        grid=grid,
        in_specs=[pl.BlockSpec((tb, in_dim), lambda i: (i, 0)),
                  resident(packed["wA"]), resident(packed["wB"]),
                  resident(packed["wC"]), resident(packed["wD"]),
                  resident(packed["wE"]), resident(packed["wF"]),
                  resident(packed["bias"])],
        out_specs=pl.BlockSpec((tb, HEAD_PAD), lambda i: (i, 0)),
        compiler_params=pltpu.CompilerParams(dimension_semantics=("parallel",)),
    )(x_flat, packed["wA"], packed["wB"], packed["wC"], packed["wD"],
      packed["wE"], packed["wF"], packed["bias"])

    q = q_full[:batch, 0:n_actions]
    return q.reshape(-1, out_shape)                              # x.reshape(-1, out_shape)


def reference_forward(x, params, out_shape: int):
    """Pure-JAX reference mirroring the module semantics (bf16 weights, f32 acc)."""
    f32, bf16 = jnp.float32, jnp.bfloat16

    def dense(h, w, b, relu=True):
        y = jnp.dot(h.astype(bf16), w.astype(bf16), preferred_element_type=f32) + b
        return jnp.maximum(y, 0.0) if relu else y

    h = x.reshape(x.shape[0], -1).astype(f32)
    for i in range(N_BACKBONE):
        h = dense(h, *params[i])
    v = dense(h, *params[8])
    v = dense(v, *params[9], relu=False)
    a = dense(h, *params[10])
    a = dense(a, *params[11], relu=False)
    q = v + a - jnp.mean(a, axis=-1, keepdims=True)
    return q.reshape(-1, out_shape)


if __name__ == "__main__":
    key = jax.random.PRNGKey(0)

    # Module config: hidden_dim = (4, 16, 16) -> prod = 1024, out_shape = 6
    hidden_dim = 4 * 16 * 16
    out_shape = 6

    kx, kp = jax.random.split(key)
    params = init_params(kp, hidden_dim, out_shape)
    packed = pack_params(params, out_shape)                      # one-time packing

    # Small-shape check (batch=2, padded internally to one 16-row tile).
    x = jax.random.normal(kx, (2, 4, 16, 16), jnp.float32)       # NCHW input
    q = jax.block_until_ready(dueling_dqn_forward(x, packed, out_shape))
    q_ref = reference_forward(x, params, out_shape)
    assert q.shape == (2, out_shape), q.shape
    assert jnp.allclose(q, q_ref, atol=2e-2, rtol=2e-2), (q, q_ref)

    # Batched check exercising the multi-step grid (TB=128, 2 grid steps).
    xb = jax.random.normal(jax.random.fold_in(kx, 1), (256, 4, 16, 16), jnp.float32)
    qb = jax.block_until_ready(dueling_dqn_forward(xb, packed, out_shape))
    qb_ref = reference_forward(xb, params, out_shape)
    assert qb.shape == (256, out_shape), qb.shape
    assert jnp.allclose(qb, qb_ref, atol=2e-2, rtol=2e-2)

    print("KERNEL_OK")
</pallas_src>

<mosaic_0001>
module attributes {stable_mosaic.version = 11 : i64} {
  func.func @dueling_dqn_kernel(%arg0: i32, %arg1: memref<16x1024xbf16, #tpu.memory_space<vmem>>, %arg2: memref<1024x32xbf16, #tpu.memory_space<vmem>>, %arg3: memref<32x64xbf16, #tpu.memory_space<vmem>>, %arg4: memref<64x384xbf16, #tpu.memory_space<vmem>>, %arg5: memref<128x384xbf16, #tpu.memory_space<vmem>>, %arg6: memref<256x640xbf16, #tpu.memory_space<vmem>>, %arg7: memref<512x256xbf16, #tpu.memory_space<vmem>>, %arg8: memref<16x512xf32, #tpu.memory_space<vmem>>, %arg9: memref<16x128xf32, #tpu.memory_space<vmem>>) attributes {dimension_semantics = [#tpu.dimension_semantics<parallel>], iteration_bounds = array<i64: 1>, scalar_prefetch = 0 : i64, scratch_operands = 0 : i64, tpu.core_type = #tpu.core_type<tc>, window_params = [{transform_indices = @transform_0, window_bounds = array<i64: 16, 1024>}, {pipeline_mode = #tpu.pipeline_mode<synchronous>, transform_indices = @transform_1, window_bounds = array<i64: 1024, 32>}, {pipeline_mode = #tpu.pipeline_mode<synchronous>, transform_indices = @transform_2, window_bounds = array<i64: 32, 64>}, {pipeline_mode = #tpu.pipeline_mode<synchronous>, transform_indices = @transform_3, window_bounds = array<i64: 64, 384>}, {pipeline_mode = #tpu.pipeline_mode<synchronous>, transform_indices = @transform_4, window_bounds = array<i64: 128, 384>}, {pipeline_mode = #tpu.pipeline_mode<synchronous>, transform_indices = @transform_5, window_bounds = array<i64: 256, 640>}, {pipeline_mode = #tpu.pipeline_mode<synchronous>, transform_indices = @transform_6, window_bounds = array<i64: 512, 256>}, {pipeline_mode = #tpu.pipeline_mode<synchronous>, transform_indices = @transform_7, window_bounds = array<i64: 16, 512>}, {transform_indices = @transform_8, window_bounds = array<i64: 16, 128>}]} {
    %c0 = arith.constant 0 : index
    %c0_0 = arith.constant 0 : index
    %0 = vector.load %arg1[%c0, %c0_0] : memref<16x1024xbf16, #tpu.memory_space<vmem>>, vector<16x1024xbf16>
    %c0_1 = arith.constant 0 : index
    %c0_2 = arith.constant 0 : index
    %1 = vector.load %arg2[%c0_1, %c0_2] : memref<1024x32xbf16, #tpu.memory_space<vmem>>, vector<1024x32xbf16>
    %cst = arith.constant dense<0.000000e+00> : vector<16x32xf32>
    %2 = tpu.matmul %0, %1, %cst {dimension_numbers = #tpu.dot_dimension_numbers<[1], [0], [0], [1], [0, 0, 1, 1], [], []>} : vector<16x1024xbf16>, vector<1024x32xbf16>, vector<16x32xf32> -> vector<16x32xf32>
    %c0_3 = arith.constant 0 : index
    %c0_4 = arith.constant 0 : index
    %3 = vector.load %arg8[%c0_3, %c0_4] : memref<16x512xf32, #tpu.memory_space<vmem>>, vector<1x32xf32>
    %4 = vector.broadcast %3 : vector<1x32xf32> to vector<16x32xf32>
    %5 = arith.addf %2, %4 : vector<16x32xf32>
    %cst_5 = arith.constant 0.000000e+00 : f32
    %6 = vector.broadcast %cst_5 : f32 to vector<16x32xf32>
    %7 = arith.maximumf %5, %6 : vector<16x32xf32>
    %c0_6 = arith.constant 0 : index
    %c0_7 = arith.constant 0 : index
    %8 = vector.load %arg3[%c0_6, %c0_7] : memref<32x64xbf16, #tpu.memory_space<vmem>>, vector<32x64xbf16>
    %9 = arith.truncf %7 : vector<16x32xf32> to vector<16x32xbf16>
    %cst_8 = arith.constant dense<0.000000e+00> : vector<16x64xf32>
    %10 = tpu.matmul %9, %8, %cst_8 {dimension_numbers = #tpu.dot_dimension_numbers<[1], [0], [0], [1], [0, 0, 1, 1], [], []>} : vector<16x32xbf16>, vector<32x64xbf16>, vector<16x64xf32> -> vector<16x64xf32>
    %c1 = arith.constant 1 : index
    %c0_9 = arith.constant 0 : index
    %11 = vector.load %arg8[%c1, %c0_9] : memref<16x512xf32, #tpu.memory_space<vmem>>, vector<1x64xf32>
    %12 = vector.broadcast %11 : vector<1x64xf32> to vector<16x64xf32>
    %13 = arith.addf %10, %12 : vector<16x64xf32>
    %cst_10 = arith.constant 0.000000e+00 : f32
    %14 = vector.broadcast %cst_10 : f32 to vector<16x64xf32>
    %15 = arith.maximumf %13, %14 : vector<16x64xf32>
    %c0_11 = arith.constant 0 : index
    %c0_12 = arith.constant 0 : index
    %16 = vector.load %arg4[%c0_11, %c0_12] : memref<64x384xbf16, #tpu.memory_space<vmem>>, vector<64x128xbf16>
    %17 = arith.truncf %15 : vector<16x64xf32> to vector<16x64xbf16>
    %cst_13 = arith.constant dense<0.000000e+00> : vector<16x128xf32>
    %18 = tpu.matmul %17, %16, %cst_13 {dimension_numbers = #tpu.dot_dimension_numbers<[1], [0], [0], [1], [0, 0, 1, 1], [], []>} : vector<16x64xbf16>, vector<64x128xbf16>, vector<16x128xf32> -> vector<16x128xf32>
    %c2 = arith.constant 2 : index
    %c0_14 = arith.constant 0 : index
    %19 = vector.load %arg8[%c2, %c0_14] : memref<16x512xf32, #tpu.memory_space<vmem>>, vector<1x128xf32>
    %20 = vector.broadcast %19 : vector<1x128xf32> to vector<16x128xf32>
    %21 = arith.addf %18, %20 : vector<16x128xf32>
    %cst_15 = arith.constant 0.000000e+00 : f32
    %22 = vector.broadcast %cst_15 : f32 to vector<16x128xf32>
    %23 = arith.maximumf %21, %22 : vector<16x128xf32>
    %c0_16 = arith.constant 0 : index
    %c0_17 = arith.constant 0 : index
    %24 = vector.load %arg5[%c0_16, %c0_17] : memref<128x384xbf16, #tpu.memory_space<vmem>>, vector<128x256xbf16>
    %25 = arith.truncf %23 : vector<16x128xf32> to vector<16x128xbf16>
    %cst_18 = arith.constant dense<0.000000e+00> : vector<16x256xf32>
    %26 = tpu.matmul %25, %24, %cst_18 {dimension_numbers = #tpu.dot_dimension_numbers<[1], [0], [0], [1], [0, 0, 1, 1], [], []>} : vector<16x128xbf16>, vector<128x256xbf16>, vector<16x256xf32> -> vector<16x256xf32>
    %c3 = arith.constant 3 : index
    %c0_19 = arith.constant 0 : index
    %27 = vector.load %arg8[%c3, %c0_19] : memref<16x512xf32, #tpu.memory_space<vmem>>, vector<1x256xf32>
    %28 = vector.broadcast %27 : vector<1x256xf32> to vector<16x256xf32>
    %29 = arith.addf %26, %28 : vector<16x256xf32>
    %cst_20 = arith.constant 0.000000e+00 : f32
    %30 = vector.broadcast %cst_20 : f32 to vector<16x256xf32>
    %31 = arith.maximumf %29, %30 : vector<16x256xf32>
    %c0_21 = arith.constant 0 : index
    %c0_22 = arith.constant 0 : index
    %32 = vector.load %arg6[%c0_21, %c0_22] : memref<256x640xbf16, #tpu.memory_space<vmem>>, vector<256x512xbf16>
    %33 = arith.truncf %31 : vector<16x256xf32> to vector<16x256xbf16>
    %cst_23 = arith.constant dense<0.000000e+00> : vector<16x512xf32>
    %34 = tpu.matmul %33, %32, %cst_23 {dimension_numbers = #tpu.dot_dimension_numbers<[1], [0], [0], [1], [0, 0, 1, 1], [], []>} : vector<16x256xbf16>, vector<256x512xbf16>, vector<16x512xf32> -> vector<16x512xf32>
    %c4 = arith.constant 4 : index
    %c0_24 = arith.constant 0 : index
    %35 = vector.load %arg8[%c4, %c0_24] : memref<16x512xf32, #tpu.memory_space<vmem>>, vector<1x512xf32>
    %36 = vector.broadcast %35 : vector<1x512xf32> to vector<16x512xf32>
    %37 = arith.addf %34, %36 : vector<16x512xf32>
    %cst_25 = arith.constant 0.000000e+00 : f32
    %38 = vector.broadcast %cst_25 : f32 to vector<16x512xf32>
    %39 = arith.maximumf %37, %38 : vector<16x512xf32>
    %c0_26 = arith.constant 0 : index
    %c0_27 = arith.constant 0 : index
    %40 = vector.load %arg7[%c0_26, %c0_27] : memref<512x256xbf16, #tpu.memory_space<vmem>>, vector<512x256xbf16>
    %41 = arith.truncf %39 : vector<16x512xf32> to vector<16x512xbf16>
    %cst_28 = arith.constant dense<0.000000e+00> : vector<16x256xf32>
    %42 = tpu.matmul %41, %40, %cst_28 {dimension_numbers = #tpu.dot_dimension_numbers<[1], [0], [0], [1], [0, 0, 1, 1], [], []>} : vector<16x512xbf16>, vector<512x256xbf16>, vector<16x256xf32> -> vector<16x256xf32>
    %c5 = arith.constant 5 : index
    %c0_29 = arith.constant 0 : index
    %43 = vector.load %arg8[%c5, %c0_29] : memref<16x512xf32, #tpu.memory_space<vmem>>, vector<1x256xf32>
    %44 = vector.broadcast %43 : vector<1x256xf32> to vector<16x256xf32>
    %45 = arith.addf %42, %44 : vector<16x256xf32>
    %cst_30 = arith.constant 0.000000e+00 : f32
    %46 = vector.broadcast %cst_30 : f32 to vector<16x256xf32>
    %47 = arith.maximumf %45, %46 : vector<16x256xf32>
    %c0_31 = arith.constant 0 : index
    %c512 = arith.constant 512 : index
    %48 = vector.load %arg6[%c0_31, %c512] : memref<256x640xbf16, #tpu.memory_space<vmem>>, vector<256x64xbf16>
    %49 = arith.truncf %47 : vector<16x256xf32> to vector<16x256xbf16>
    %cst_32 = arith.constant dense<0.000000e+00> : vector<16x64xf32>
    %50 = tpu.matmul %49, %48, %cst_32 {dimension_numbers = #tpu.dot_dimension_numbers<[1], [0], [0], [1], [0, 0, 1, 1], [], []>} : vector<16x256xbf16>, vector<256x64xbf16>, vector<16x64xf32> -> vector<16x64xf32>
    %c6 = arith.constant 6 : index
    %c0_33 = arith.constant 0 : index
    %51 = vector.load %arg8[%c6, %c0_33] : memref<16x512xf32, #tpu.memory_space<vmem>>, vector<1x64xf32>
    %52 = vector.broadcast %51 : vector<1x64xf32> to vector<16x64xf32>
    %53 = arith.addf %50, %52 : vector<16x64xf32>
    %cst_34 = arith.constant 0.000000e+00 : f32
    %54 = vector.broadcast %cst_34 : f32 to vector<16x64xf32>
    %55 = arith.maximumf %53, %54 : vector<16x64xf32>
    %c0_35 = arith.constant 0 : index
    %c128 = arith.constant 128 : index
    %56 = vector.load %arg4[%c0_35, %c128] : memref<64x384xbf16, #tpu.memory_space<vmem>>, vector<64x64xbf16>
    %57 = arith.truncf %55 : vector<16x64xf32> to vector<16x64xbf16>
    %cst_36 = arith.constant dense<0.000000e+00> : vector<16x64xf32>
    %58 = tpu.matmul %57, %56, %cst_36 {dimension_numbers = #tpu.dot_dimension_numbers<[1], [0], [0], [1], [0, 0, 1, 1], [], []>} : vector<16x64xbf16>, vector<64x64xbf16>, vector<16x64xf32> -> vector<16x64xf32>
    %c7 = arith.constant 7 : index
    %c0_37 = arith.constant 0 : index
    %59 = vector.load %arg8[%c7, %c0_37] : memref<16x512xf32, #tpu.memory_space<vmem>>, vector<1x64xf32>
    %60 = vector.broadcast %59 : vector<1x64xf32> to vector<16x64xf32>
    %61 = arith.addf %58, %60 : vector<16x64xf32>
    %cst_38 = arith.constant 0.000000e+00 : f32
    %62 = vector.broadcast %cst_38 : f32 to vector<16x64xf32>
    %63 = arith.maximumf %61, %62 : vector<16x64xf32>
    %c0_39 = arith.constant 0 : index
    %c256 = arith.constant 256 : index
    %64 = vector.load %arg4[%c0_39, %c256] : memref<64x384xbf16, #tpu.memory_space<vmem>>, vector<64x128xbf16>
    %65 = arith.truncf %63 : vector<16x64xf32> to vector<16x64xbf16>
    %cst_40 = arith.constant dense<0.000000e+00> : vector<16x128xf32>
    %66 = tpu.matmul %65, %64, %cst_40 {dimension_numbers = #tpu.dot_dimension_numbers<[1], [0], [0], [1], [0, 0, 1, 1], [], []>} : vector<16x64xbf16>, vector<64x128xbf16>, vector<16x128xf32> -> vector<16x128xf32>
    %c8 = arith.constant 8 : index
    %c0_41 = arith.constant 0 : index
    %67 = vector.load %arg8[%c8, %c0_41] : memref<16x512xf32, #tpu.memory_space<vmem>>, vector<1x128xf32>
    %68 = vector.broadcast %67 : vector<1x128xf32> to vector<16x128xf32>
    %69 = arith.addf %66, %68 : vector<16x128xf32>
    %cst_42 = arith.constant 0.000000e+00 : f32
    %70 = vector.broadcast %cst_42 : f32 to vector<16x128xf32>
    %71 = arith.maximumf %69, %70 : vector<16x128xf32>
    %c0_43 = arith.constant 0 : index
    %c256_44 = arith.constant 256 : index
    %72 = vector.load %arg5[%c0_43, %c256_44] : memref<128x384xbf16, #tpu.memory_space<vmem>>, vector<128x128xbf16>
    %73 = arith.truncf %71 : vector<16x128xf32> to vector<16x128xbf16>
    %cst_45 = arith.constant dense<0.000000e+00> : vector<16x128xf32>
    %74 = tpu.matmul %73, %72, %cst_45 {dimension_numbers = #tpu.dot_dimension_numbers<[1], [0], [0], [1], [0, 0, 1, 1], [], []>} : vector<16x128xbf16>, vector<128x128xbf16>, vector<16x128xf32> -> vector<16x128xf32>
    %c9 = arith.constant 9 : index
    %c0_46 = arith.constant 0 : index
    %75 = vector.load %arg8[%c9, %c0_46] : memref<16x512xf32, #tpu.memory_space<vmem>>, vector<1x128xf32>
    %76 = vector.broadcast %75 : vector<1x128xf32> to vector<16x128xf32>
    %77 = arith.addf %74, %76 : vector<16x128xf32>
    %c0_47 = arith.constant 0 : index
    %c0_48 = arith.constant 0 : index
    %78 = vector.load %arg9[%c0_47, %c0_48] : memref<16x128xf32, #tpu.memory_space<vmem>>, vector<16x128xf32>
    tpu.vector_store %arg9[%c0_47, %c0_48], %77 {strides = array<i32>} : memref<16x128xf32, #tpu.memory_space<vmem>>, vector<16x128xf32>,
    return
  }
  func.func @transform_0(%arg0: i32) -> (i32, i32) {
    %c0_i32 = arith.constant 0 : i32
    %c0_i32_0 = arith.constant 0 : i32
    return %arg0, %c0_i32 : i32, i32
  }
  func.func @transform_1(%arg0: i32) -> (i32, i32) {
    %c0_i32 = arith.constant 0 : i32
    %c0_i32_0 = arith.constant 0 : i32
    %c0_i32_1 = arith.constant 0 : i32
    return %c0_i32, %c0_i32_0 : i32, i32
  }
  func.func @transform_2(%arg0: i32) -> (i32, i32) {
    %c0_i32 = arith.constant 0 : i32
    %c0_i32_0 = arith.constant 0 : i32
    %c0_i32_1 = arith.constant 0 : i32
    return %c0_i32, %c0_i32_0 : i32, i32
  }
  func.func @transform_3(%arg0: i32) -> (i32, i32) {
    %c0_i32 = arith.constant 0 : i32
    %c0_i32_0 = arith.constant 0 : i32
    %c0_i32_1 = arith.constant 0 : i32
    return %c0_i32, %c0_i32_0 : i32, i32
  }
  func.func @transform_4(%arg0: i32) -> (i32, i32) {
    %c0_i32 = arith.constant 0 : i32
    %c0_i32_0 = arith.constant 0 : i32
    %c0_i32_1 = arith.constant 0 : i32
    return %c0_i32, %c0_i32_0 : i32, i32
  }
  func.func @transform_5(%arg0: i32) -> (i32, i32) {
    %c0_i32 = arith.constant 0 : i32
    %c0_i32_0 = arith.constant 0 : i32
    %c0_i32_1 = arith.constant 0 : i32
    return %c0_i32, %c0_i32_0 : i32, i32
  }
  func.func @transform_6(%arg0: i32) -> (i32, i32) {
    %c0_i32 = arith.constant 0 : i32
    %c0_i32_0 = arith.constant 0 : i32
    %c0_i32_1 = arith.constant 0 : i32
    return %c0_i32, %c0_i32_0 : i32, i32
  }
  func.func @transform_7(%arg0: i32) -> (i32, i32) {
    %c0_i32 = arith.constant 0 : i32
    %c0_i32_0 = arith.constant 0 : i32
    %c0_i32_1 = arith.constant 0 : i32
    return %c0_i32, %c0_i32_0 : i32, i32
  }
  func.func @transform_8(%arg0: i32) -> (i32, i32) {
    %c0_i32 = arith.constant 0 : i32
    %c0_i32_0 = arith.constant 0 : i32
    return %arg0, %c0_i32 : i32, i32
  }
}

</mosaic_0001>

<llo_original>
// kernel: dueling_dqn_forward.1
$region0: #{dueling_dqn_forward.1}
  #allocation0 [shape = 'u32[]', space=smem, size = 0x4, offset = 0x4, fixed_abs, tag = 'smem constant byte address 0x4 - core index']
  #allocation1 [shape = 'u32[144,128]{1,0:T(1,128)}', space=vmem, size = 0x12000, scoped, tag = 'internal scratch']
  %s0 = inlined_call_operand.vmem [shape: bf16[16,1024], index: 0, kind: input, shape index: {}]
  %s1 = inlined_call_operand.vmem [shape: bf16[1024,32], index: 1, kind: input, shape index: {}]
  %s2 = inlined_call_operand.hbm [shape: bf16[32,64], index: 2, kind: input, shape index: {}]
  %s3 = inlined_call_operand.vmem [shape: bf16[64,384], index: 3, kind: input, shape index: {}]
  %s4 = inlined_call_operand.vmem [shape: bf16[128,384], index: 4, kind: input, shape index: {}]
  %s5 = inlined_call_operand.vmem [shape: bf16[256,640], index: 5, kind: input, shape index: {}]
  %s6 = inlined_call_operand.hbm [shape: bf16[512,256], index: 6, kind: input, shape index: {}]
  %s7 = inlined_call_operand.vmem [shape: f32[16,512], index: 7, kind: input, shape index: {}]
  %s8 = inlined_call_operand.vmem [shape: f32[16,128], index: 8, kind: output, shape index: {}]
  %s9 = sld [smem:[#allocation0]]
  $region50: #{dueling_dqn_forward.1} parent=0
    _
  %s11 = ssub.s32 1, %s9
  %s12 = scalar_select 0, %s11, %s9
  $region1: #{dueling_dqn_forward.1} parent=0
    #allocation2 [shape = 'u8[8192]{0}', space=vmem, size = 0x2000, scoped, tag = 'input window, operand 2, single buffered']
    #allocation3 [shape = 's32[1]{0}', space=sflag, size = 0x4, scoped, tag = 'scoped memory for dueling_dqn_forward.1']
    #allocation4 [shape = 'u8[262144]{0}', space=vmem, size = 0x40000, scoped, tag = 'input window, operand 6, single buffered']
    #allocation5 [shape = 's32[1]{0}', space=sflag, size = 0x4, scoped, tag = 'scoped memory for dueling_dqn_forward.1']
    %13 = vsyncpa [#allocation3], 0
    %14 = vsyncpa [#allocation5], 0
    // Predicated region
    $region2: #{dueling_dqn_forward.1} parent=1 // pred_check
      _
    $region3: #{dueling_dqn_forward.1} parent=1 // pred_check_branch
      %16 = sbr.rel (0) target = $region5
    $region4: #{dueling_dqn_forward.1} parent=1 // pred_region
      _
    $region5: #{dueling_dqn_forward.1} parent=1 // pred_fallthru
      _
    // Predicated region
    $region6: #{dueling_dqn_forward.1} parent=1 // pred_check
      _
    $region7: #{dueling_dqn_forward.1} parent=1 // pred_check_branch
      %18 = sbr.rel (0) target = $region9
    $region8: #{dueling_dqn_forward.1} parent=1 // pred_region
      _
    $region9: #{dueling_dqn_forward.1} parent=1 // pred_fallthru
      _
    // Predicated region
    $region10: #{dueling_dqn_forward.1} parent=1 // pred_check
      _
    $region11: #{dueling_dqn_forward.1} parent=1 // pred_check_branch
      %20 = sbr.rel (0) target = $region13
    $region12: #{dueling_dqn_forward.1} parent=1 // pred_region
      %s22 = ssub.s32 256, 256
      %23 = vsyncadd [#allocation3], %s22
      %s24 = sshll.u32 [#allocation2], 4
      %s25 = int_to_ptr.vmem [resolvable:$true] %s24
      %30 = dma.hbm_to_vmem [thread:$0]  %s2, 256, %s25, [#allocation3], 64, 64, 4
    $region13: #{dueling_dqn_forward.1} parent=1 // pred_fallthru
      _
    // Predicated region
    $region14: #{dueling_dqn_forward.1} parent=1 // pred_check
      _
    $region15: #{dueling_dqn_forward.1} parent=1 // pred_check_branch
      %32 = sbr.rel (0) target = $region17
    $region16: #{dueling_dqn_forward.1} parent=1 // pred_region
      _
    $region17: #{dueling_dqn_forward.1} parent=1 // pred_fallthru
      _
    // Predicated region
    $region18: #{dueling_dqn_forward.1} parent=1 // pred_check
      _
    $region19: #{dueling_dqn_forward.1} parent=1 // pred_check_branch
      %34 = sbr.rel (0) target = $region21
    $region20: #{dueling_dqn_forward.1} parent=1 // pred_region
      _
    $region21: #{dueling_dqn_forward.1} parent=1 // pred_fallthru
      _
    // Predicated region
    $region22: #{dueling_dqn_forward.1} parent=1 // pred_check
      _
    $region23: #{dueling_dqn_forward.1} parent=1 // pred_check_branch
      %36 = sbr.rel (0) target = $region25
    $region24: #{dueling_dqn_forward.1} parent=1 // pred_region
      _
    $region25: #{dueling_dqn_forward.1} parent=1 // pred_fallthru
      _
    // Predicated region
    $region26: #{dueling_dqn_forward.1} parent=1 // pred_check
      _
    $region27: #{dueling_dqn_forward.1} parent=1 // pred_check_branch
      %38 = sbr.rel (0) target = $region29
    $region28: #{dueling_dqn_forward.1} parent=1 // pred_region
      %s40 = ssub.s32 8192, 8192
      %41 = vsyncadd [#allocation5], %s40
      %s42 = sshll.u32 [#allocation4], 4
      %s43 = int_to_ptr.vmem [resolvable:$true] %s42
      %48 = dma.hbm_to_vmem [thread:$0]  %s6, 8192, %s43, [#allocation5], 128, 128, 8
    $region29: #{dueling_dqn_forward.1} parent=1 // pred_fallthru
      _
    // Predicated region
    $region30: #{dueling_dqn_forward.1} parent=1 // pred_check
      _
    $region31: #{dueling_dqn_forward.1} parent=1 // pred_check_branch
      %50 = sbr.rel (0) target = $region33
    $region32: #{dueling_dqn_forward.1} parent=1 // pred_region
      _
    $region33: #{dueling_dqn_forward.1} parent=1 // pred_fallthru
      _
    // Predicated region
    $region34: #{dueling_dqn_forward.1} parent=1 // pred_check
      _
    $region35: #{dueling_dqn_forward.1} parent=1 // pred_check_branch
      %52 = sbr.rel (0) target = $region37
    $region36: #{dueling_dqn_forward.1} parent=1 // pred_region
      %53 = dma.done [#allocation3], 256
    $region37: #{dueling_dqn_forward.1} parent=1 // pred_fallthru
      _
    // Predicated region
    $region38: #{dueling_dqn_forward.1} parent=1 // pred_check
      _
    $region39: #{dueling_dqn_forward.1} parent=1 // pred_check_branch
      %55 = sbr.rel (0) target = $region41
    $region40: #{dueling_dqn_forward.1} parent=1 // pred_region
      %56 = dma.done [#allocation5], 8192
    $region41: #{dueling_dqn_forward.1} parent=1 // pred_fallthru
      _
    %v58 = vld [vmem:[%s0] sm:$0xff]
    %v59 = vld [vmem:[%s0 + $0x8] sm:$0xff]
    %v60 = vld [vmem:[%s0 + $0x10] sm:$0xff]
    %v61 = vld [vmem:[%s0 + $0x18] sm:$0xff]
    %v62 = vld [vmem:[%s0 + $0x20] sm:$0xff]
    %v63 = vld [vmem:[%s0 + $0x28] sm:$0xff]
    %v64 = vld [vmem:[%s0 + $0x30] sm:$0xff]
    %v65 = vld [vmem:[%s0 + $0x38] sm:$0xff]
    %v66 = vld [vmem:[%s1] sm:$0xf]
    %v67 = vld [vmem:[%s1 + $0x4] sm:$0xf]
    %v68 = vld [vmem:[%s1 + $0x8] sm:$0xf]
    %v69 = vld [vmem:[%s1 + $0xc] sm:$0xf]
    %v70 = vld [vmem:[%s1 + $0x10] sm:$0xf]
    %v71 = vld [vmem:[%s1 + $0x14] sm:$0xf]
    %v72 = vld [vmem:[%s1 + $0x18] sm:$0xf]
    %v73 = vld [vmem:[%s1 + $0x1c] sm:$0xf]
    %v74 = vld [vmem:[%s1 + $0x20] sm:$0xf]
    %v75 = vld [vmem:[%s1 + $0x24] sm:$0xf]
    %v76 = vld [vmem:[%s1 + $0x28] sm:$0xf]
    %v77 = vld [vmem:[%s1 + $0x2c] sm:$0xf]
    %v78 = vld [vmem:[%s1 + $0x30] sm:$0xf]
    %v79 = vld [vmem:[%s1 + $0x34] sm:$0xf]
    %v80 = vld [vmem:[%s1 + $0x38] sm:$0xf]
    %v81 = vld [vmem:[%s1 + $0x3c] sm:$0xf]
    %v82 = vld [vmem:[%s1 + $0x40] sm:$0xf]
    %v83 = vld [vmem:[%s1 + $0x44] sm:$0xf]
    %v84 = vld [vmem:[%s1 + $0x48] sm:$0xf]
    %v85 = vld [vmem:[%s1 + $0x4c] sm:$0xf]
    %v86 = vld [vmem:[%s1 + $0x50] sm:$0xf]
    %v87 = vld [vmem:[%s1 + $0x54] sm:$0xf]
    %v88 = vld [vmem:[%s1 + $0x58] sm:$0xf]
    %v89 = vld [vmem:[%s1 + $0x5c] sm:$0xf]
    %v90 = vld [vmem:[%s1 + $0x60] sm:$0xf]
    %v91 = vld [vmem:[%s1 + $0x64] sm:$0xf]
    %v92 = vld [vmem:[%s1 + $0x68] sm:$0xf]
    %v93 = vld [vmem:[%s1 + $0x6c] sm:$0xf]
    %v94 = vld [vmem:[%s1 + $0x70] sm:$0xf]
    %v95 = vld [vmem:[%s1 + $0x74] sm:$0xf]
    %v96 = vld [vmem:[%s1 + $0x78] sm:$0xf]
    %v97 = vld [vmem:[%s1 + $0x7c] sm:$0xf]
    %v98 = vld [vmem:[%s1 + $0x80] sm:$0xf]
    %v99 = vld [vmem:[%s1 + $0x84] sm:$0xf]
    %v100 = vld [vmem:[%s1 + $0x88] sm:$0xf]
    %v101 = vld [vmem:[%s1 + $0x8c] sm:$0xf]
    %v102 = vld [vmem:[%s1 + $0x90] sm:$0xf]
    %v103 = vld [vmem:[%s1 + $0x94] sm:$0xf]
    %v104 = vld [vmem:[%s1 + $0x98] sm:$0xf]
    %v105 = vld [vmem:[%s1 + $0x9c] sm:$0xf]
    %v106 = vld [vmem:[%s1 + $0xa0] sm:$0xf]
    %v107 = vld [vmem:[%s1 + $0xa4] sm:$0xf]
    %v108 = vld [vmem:[%s1 + $0xa8] sm:$0xf]
    %v109 = vld [vmem:[%s1 + $0xac] sm:$0xf]
    %v110 = vld [vmem:[%s1 + $0xb0] sm:$0xf]
    %v111 = vld [vmem:[%s1 + $0xb4] sm:$0xf]
    %v112 = vld [vmem:[%s1 + $0xb8] sm:$0xf]
    %v113 = vld [vmem:[%s1 + $0xbc] sm:$0xf]
    %v114 = vld [vmem:[%s1 + $0xc0] sm:$0xf]
    %v115 = vld [vmem:[%s1 + $0xc4] sm:$0xf]
    %v116 = vld [vmem:[%s1 + $0xc8] sm:$0xf]
    %v117 = vld [vmem:[%s1 + $0xcc] sm:$0xf]
    %v118 = vld [vmem:[%s1 + $0xd0] sm:$0xf]
    %v119 = vld [vmem:[%s1 + $0xd4] sm:$0xf]
    %v120 = vld [vmem:[%s1 + $0xd8] sm:$0xf]
    %v121 = vld [vmem:[%s1 + $0xdc] sm:$0xf]
    %v122 = vld [vmem:[%s1 + $0xe0] sm:$0xf]
    %v123 = vld [vmem:[%s1 + $0xe4] sm:$0xf]
    %v124 = vld [vmem:[%s1 + $0xe8] sm:$0xf]
    %v125 = vld [vmem:[%s1 + $0xec] sm:$0xf]
    %v126 = vld [vmem:[%s1 + $0xf0] sm:$0xf]
    %v127 = vld [vmem:[%s1 + $0xf4] sm:$0xf]
    %v128 = vld [vmem:[%s1 + $0xf8] sm:$0xf]
    %v129 = vld [vmem:[%s1 + $0xfc] sm:$0xf]
    %v130 = vld [vmem:[%s1 + $0x100] sm:$0xf]
    %v131 = vld [vmem:[%s1 + $0x104] sm:$0xf]
    %v132 = vld [vmem:[%s1 + $0x108] sm:$0xf]
    %v133 = vld [vmem:[%s1 + $0x10c] sm:$0xf]
    %v134 = vld [vmem:[%s1 + $0x110] sm:$0xf]
    %v135 = vld [vmem:[%s1 + $0x114] sm:$0xf]
    %v136 = vld [vmem:[%s1 + $0x118] sm:$0xf]
    %v137 = vld [vmem:[%s1 + $0x11c] sm:$0xf]
    %v138 = vld [vmem:[%s1 + $0x120] sm:$0xf]
    %v139 = vld [vmem:[%s1 + $0x124] sm:$0xf]
    %v140 = vld [vmem:[%s1 + $0x128] sm:$0xf]
    %v141 = vld [vmem:[%s1 + $0x12c] sm:$0xf]
    %v142 = vld [vmem:[%s1 + $0x130] sm:$0xf]
    %v143 = vld [vmem:[%s1 + $0x134] sm:$0xf]
    %v144 = vld [vmem:[%s1 + $0x138] sm:$0xf]
    %v145 = vld [vmem:[%s1 + $0x13c] sm:$0xf]
    %v146 = vld [vmem:[%s1 + $0x140] sm:$0xf]
    %v147 = vld [vmem:[%s1 + $0x144] sm:$0xf]
    %v148 = vld [vmem:[%s1 + $0x148] sm:$0xf]
    %v149 = vld [vmem:[%s1 + $0x14c] sm:$0xf]
    %v150 = vld [vmem:[%s1 + $0x150] sm:$0xf]
    %v151 = vld [vmem:[%s1 + $0x154] sm:$0xf]
    %v152 = vld [vmem:[%s1 + $0x158] sm:$0xf]
    %v153 = vld [vmem:[%s1 + $0x15c] sm:$0xf]
    %v154 = vld [vmem:[%s1 + $0x160] sm:$0xf]
    %v155 = vld [vmem:[%s1 + $0x164] sm:$0xf]
    %v156 = vld [vmem:[%s1 + $0x168] sm:$0xf]
    %v157 = vld [vmem:[%s1 + $0x16c] sm:$0xf]
    %v158 = vld [vmem:[%s1 + $0x170] sm:$0xf]
    %v159 = vld [vmem:[%s1 + $0x174] sm:$0xf]
    %v160 = vld [vmem:[%s1 + $0x178] sm:$0xf]
    %v161 = vld [vmem:[%s1 + $0x17c] sm:$0xf]
    %v162 = vld [vmem:[%s1 + $0x180] sm:$0xf]
    %v163 = vld [vmem:[%s1 + $0x184] sm:$0xf]
    %v164 = vld [vmem:[%s1 + $0x188] sm:$0xf]
    %v165 = vld [vmem:[%s1 + $0x18c] sm:$0xf]
    %v166 = vld [vmem:[%s1 + $0x190] sm:$0xf]
    %v167 = vld [vmem:[%s1 + $0x194] sm:$0xf]
    %v168 = vld [vmem:[%s1 + $0x198] sm:$0xf]
    %v169 = vld [vmem:[%s1 + $0x19c] sm:$0xf]
    %v170 = vld [vmem:[%s1 + $0x1a0] sm:$0xf]
    %v171 = vld [vmem:[%s1 + $0x1a4] sm:$0xf]
    %v172 = vld [vmem:[%s1 + $0x1a8] sm:$0xf]
    %v173 = vld [vmem:[%s1 + $0x1ac] sm:$0xf]
    %v174 = vld [vmem:[%s1 + $0x1b0] sm:$0xf]
    %v175 = vld [vmem:[%s1 + $0x1b4] sm:$0xf]
    %v176 = vld [vmem:[%s1 + $0x1b8] sm:$0xf]
    %v177 = vld [vmem:[%s1 + $0x1bc] sm:$0xf]
    %v178 = vld [vmem:[%s1 + $0x1c0] sm:$0xf]
    %v179 = vld [vmem:[%s1 + $0x1c4] sm:$0xf]
    %v180 = vld [vmem:[%s1 + $0x1c8] sm:$0xf]
    %v181 = vld [vmem:[%s1 + $0x1cc] sm:$0xf]
    %v182 = vld [vmem:[%s1 + $0x1d0] sm:$0xf]
    %v183 = vld [vmem:[%s1 + $0x1d4] sm:$0xf]
    %v184 = vld [vmem:[%s1 + $0x1d8] sm:$0xf]
    %v185 = vld [vmem:[%s1 + $0x1dc] sm:$0xf]
    %v186 = vld [vmem:[%s1 + $0x1e0] sm:$0xf]
    %v187 = vld [vmem:[%s1 + $0x1e4] sm:$0xf]
    %v188 = vld [vmem:[%s1 + $0x1e8] sm:$0xf]
    %v189 = vld [vmem:[%s1 + $0x1ec] sm:$0xf]
    %v190 = vld [vmem:[%s1 + $0x1f0] sm:$0xf]
    %v191 = vld [vmem:[%s1 + $0x1f4] sm:$0xf]
    %v192 = vld [vmem:[%s1 + $0x1f8] sm:$0xf]
    %v193 = vld [vmem:[%s1 + $0x1fc] sm:$0xf]
    %v194 = vld [vmem:[%s7] ss:$0 sm:$0xff]
    %v203 = vunpack.c.l.b16 %v58
    %v204 = vunpack.c.h.b16 %v58
    %v205 = vunpack.c.l.b16 %v59
    %v206 = vunpack.c.h.b16 %v59
    %v207 = vunpack.c.l.b16 %v60
    %v208 = vunpack.c.h.b16 %v60
    %v209 = vunpack.c.l.b16 %v61
    %v210 = vunpack.c.h.b16 %v61
    %v211 = vunpack.c.l.b16 %v62
    %v212 = vunpack.c.h.b16 %v62
    %v213 = vunpack.c.l.b16 %v63
    %v214 = vunpack.c.h.b16 %v63
    %v215 = vunpack.c.l.b16 %v64
    %v216 = vunpack.c.h.b16 %v64
    %v217 = vunpack.c.l.b16 %v65
    %v218 = vunpack.c.h.b16 %v65
    %v219 = vpack.c.b16 %v211, %v203
    %v220 = vpack.c.b16 %v212, %v204
    %v221 = vpack.c.b16 %v213, %v205
    %v222 = vpack.c.b16 %v214, %v206
    %v223 = vpack.c.b16 %v215, %v207
    %v224 = vpack.c.b16 %v216, %v208
    %v225 = vpack.c.b16 %v217, %v209
    %v226 = vpack.c.b16 %v218, %v210
    %v363 = vunpack.c.l.b16 %v66
    %v364 = vunpack.c.l.b16 %v67
    %v365 = vunpack.c.l.b16 %v68
    %v366 = vunpack.c.l.b16 %v69
    %v367 = vunpack.c.l.b16 %v70
    %v368 = vunpack.c.l.b16 %v71
    %v369 = vunpack.c.l.b16 %v72
    %v370 = vunpack.c.l.b16 %v73
    %v371 = vunpack.c.l.b16 %v74
    %v372 = vunpack.c.l.b16 %v75
    %v373 = vunpack.c.l.b16 %v76
    %v374 = vunpack.c.l.b16 %v77
    %v375 = vunpack.c.l.b16 %v78
    %v376 = vunpack.c.l.b16 %v79
    %v377 = vunpack.c.l.b16 %v80
    %v378 = vunpack.c.l.b16 %v81
    %v379 = vunpack.c.l.b16 %v82
    %v380 = vunpack.c.l.b16 %v83
    %v381 = vunpack.c.l.b16 %v84
    %v382 = vunpack.c.l.b16 %v85
    %v383 = vunpack.c.l.b16 %v86
    %v384 = vunpack.c.l.b16 %v87
    %v385 = vunpack.c.l.b16 %v88
    %v386 = vunpack.c.l.b16 %v89
    %v387 = vunpack.c.l.b16 %v90
    %v388 = vunpack.c.l.b16 %v91
    %v389 = vunpack.c.l.b16 %v92
    %v390 = vunpack.c.l.b16 %v93
    %v391 = vunpack.c.l.b16 %v94
    %v392 = vunpack.c.l.b16 %v95
    %v393 = vunpack.c.l.b16 %v96
    %v394 = vunpack.c.l.b16 %v97
    %v395 = vunpack.c.l.b16 %v98
    %v396 = vunpack.c.l.b16 %v99
    %v397 = vunpack.c.l.b16 %v100
    %v398 = vunpack.c.l.b16 %v101
    %v399 = vunpack.c.l.b16 %v102
    %v400 = vunpack.c.l.b16 %v103
    %v401 = vunpack.c.l.b16 %v104
    %v402 = vunpack.c.l.b16 %v105
    %v403 = vunpack.c.l.b16 %v106
    %v404 = vunpack.c.l.b16 %v107
    %v405 = vunpack.c.l.b16 %v108
    %v406 = vunpack.c.l.b16 %v109
    %v407 = vunpack.c.l.b16 %v110
    %v408 = vunpack.c.l.b16 %v111
    %v409 = vunpack.c.l.b16 %v112
    %v410 = vunpack.c.l.b16 %v113
    %v411 = vunpack.c.l.b16 %v114
    %v412 = vunpack.c.l.b16 %v115
    %v413 = vunpack.c.l.b16 %v116
    %v414 = vunpack.c.l.b16 %v117
    %v415 = vunpack.c.l.b16 %v118
    %v416 = vunpack.c.l.b16 %v119
    %v417 = vunpack.c.l.b16 %v120
    %v418 = vunpack.c.l.b16 %v121
    %v419 = vunpack.c.l.b16 %v122
    %v420 = vunpack.c.l.b16 %v123
    %v421 = vunpack.c.l.b16 %v124
    %v422 = vunpack.c.l.b16 %v125
    %v423 = vunpack.c.l.b16 %v126
    %v424 = vunpack.c.l.b16 %v127
    %v425 = vunpack.c.l.b16 %v128
    %v426 = vunpack.c.l.b16 %v129
    %v427 = vunpack.c.l.b16 %v130
    %v428 = vunpack.c.l.b16 %v131
    %v429 = vunpack.c.l.b16 %v132
    %v430 = vunpack.c.l.b16 %v133
    %v431 = vunpack.c.l.b16 %v134
    %v432 = vunpack.c.l.b16 %v135
    %v433 = vunpack.c.l.b16 %v136
    %v434 = vunpack.c.l.b16 %v137
    %v435 = vunpack.c.l.b16 %v138
    %v436 = vunpack.c.l.b16 %v139
    %v437 = vunpack.c.l.b16 %v140
    %v438 = vunpack.c.l.b16 %v141
    %v439 = vunpack.c.l.b16 %v142
    %v440 = vunpack.c.l.b16 %v143
    %v441 = vunpack.c.l.b16 %v144
    %v442 = vunpack.c.l.b16 %v145
    %v443 = vunpack.c.l.b16 %v146
    %v444 = vunpack.c.l.b16 %v147
    %v445 = vunpack.c.l.b16 %v148
    %v446 = vunpack.c.l.b16 %v149
    %v447 = vunpack.c.l.b16 %v150
    %v448 = vunpack.c.l.b16 %v151
    %v449 = vunpack.c.l.b16 %v152
    %v450 = vunpack.c.l.b16 %v153
    %v451 = vunpack.c.l.b16 %v154
    %v452 = vunpack.c.l.b16 %v155
    %v453 = vunpack.c.l.b16 %v156
    %v454 = vunpack.c.l.b16 %v157
    %v455 = vunpack.c.l.b16 %v158
    %v456 = vunpack.c.l.b16 %v159
    %v457 = vunpack.c.l.b16 %v160
    %v458 = vunpack.c.l.b16 %v161
    %v459 = vunpack.c.l.b16 %v162
    %v460 = vunpack.c.l.b16 %v163
    %v461 = vunpack.c.l.b16 %v164
    %v462 = vunpack.c.l.b16 %v165
    %v463 = vunpack.c.l.b16 %v166
    %v464 = vunpack.c.l.b16 %v167
    %v465 = vunpack.c.l.b16 %v168
    %v466 = vunpack.c.l.b16 %v169
    %v467 = vunpack.c.l.b16 %v170
    %v468 = vunpack.c.l.b16 %v171
    %v469 = vunpack.c.l.b16 %v172
    %v470 = vunpack.c.l.b16 %v173
    %v471 = vunpack.c.l.b16 %v174
    %v472 = vunpack.c.l.b16 %v175
    %v473 = vunpack.c.l.b16 %v176
    %v474 = vunpack.c.l.b16 %v177
    %v475 = vunpack.c.l.b16 %v178
    %v476 = vunpack.c.l.b16 %v179
    %v477 = vunpack.c.l.b16 %v180
    %v478 = vunpack.c.l.b16 %v181
    %v479 = vunpack.c.l.b16 %v182
    %v480 = vunpack.c.l.b16 %v183
    %v481 = vunpack.c.l.b16 %v184
    %v482 = vunpack.c.l.b16 %v185
    %v483 = vunpack.c.l.b16 %v186
    %v484 = vunpack.c.l.b16 %v187
    %v485 = vunpack.c.l.b16 %v188
    %v486 = vunpack.c.l.b16 %v189
    %v487 = vunpack.c.l.b16 %v190
    %v488 = vunpack.c.l.b16 %v191
    %v489 = vunpack.c.l.b16 %v192
    %v490 = vunpack.c.l.b16 %v193
    %v491 = vpack.c.b16 %v364, %v363
    %v492 = vpack.c.b16 %v366, %v365
    %v493 = vpack.c.b16 %v368, %v367
    %v494 = vpack.c.b16 %v370, %v369
    %v495 = vpack.c.b16 %v372, %v371
    %v496 = vpack.c.b16 %v374, %v373
    %v497 = vpack.c.b16 %v376, %v375
    %v498 = vpack.c.b16 %v378, %v377
    %v499 = vpack.c.b16 %v380, %v379
    %v500 = vpack.c.b16 %v382, %v381
    %v501 = vpack.c.b16 %v384, %v383
    %v502 = vpack.c.b16 %v386, %v385
    %v503 = vpack.c.b16 %v388, %v387
    %v504 = vpack.c.b16 %v390, %v389
    %v505 = vpack.c.b16 %v392, %v391
    %v506 = vpack.c.b16 %v394, %v393
    %v507 = vpack.c.b16 %v396, %v395
    %v508 = vpack.c.b16 %v398, %v397
    %v509 = vpack.c.b16 %v400, %v399
    %v510 = vpack.c.b16 %v402, %v401
    %v511 = vpack.c.b16 %v404, %v403
    %v512 = vpack.c.b16 %v406, %v405
    %v513 = vpack.c.b16 %v408, %v407
    %v514 = vpack.c.b16 %v410, %v409
    %v515 = vpack.c.b16 %v412, %v411
    %v516 = vpack.c.b16 %v414, %v413
    %v517 = vpack.c.b16 %v416, %v415
    %v518 = vpack.c.b16 %v418, %v417
    %v519 = vpack.c.b16 %v420, %v419
    %v520 = vpack.c.b16 %v422, %v421
    %v521 = vpack.c.b16 %v424, %v423
    %v522 = vpack.c.b16 %v426, %v425
    %v523 = vpack.c.b16 %v428, %v427
    %v524 = vpack.c.b16 %v430, %v429
    %v525 = vpack.c.b16 %v432, %v431
    %v526 = vpack.c.b16 %v434, %v433
    %v527 = vpack.c.b16 %v436, %v435
    %v528 = vpack.c.b16 %v438, %v437
    %v529 = vpack.c.b16 %v440, %v439
    %v530 = vpack.c.b16 %v442, %v441
    %v531 = vpack.c.b16 %v444, %v443
    %v532 = vpack.c.b16 %v446, %v445
    %v533 = vpack.c.b16 %v448, %v447
    %v534 = vpack.c.b16 %v450, %v449
    %v535 = vpack.c.b16 %v452, %v451
    %v536 = vpack.c.b16 %v454, %v453
    %v537 = vpack.c.b16 %v456, %v455
    %v538 = vpack.c.b16 %v458, %v457
    %v539 = vpack.c.b16 %v460, %v459
    %v540 = vpack.c.b16 %v462, %v461
    %v541 = vpack.c.b16 %v464, %v463
    %v542 = vpack.c.b16 %v466, %v465
    %v543 = vpack.c.b16 %v468, %v467
    %v544 = vpack.c.b16 %v470, %v469
    %v545 = vpack.c.b16 %v472, %v471
    %v546 = vpack.c.b16 %v474, %v473
    %v547 = vpack.c.b16 %v476, %v475
    %v548 = vpack.c.b16 %v478, %v477
    %v549 = vpack.c.b16 %v480, %v479
    %v550 = vpack.c.b16 %v482, %v481
    %v551 = vpack.c.b16 %v484, %v483
    %v552 = vpack.c.b16 %v486, %v485
    %v553 = vpack.c.b16 %v488, %v487
    %v554 = vpack.c.b16 %v490, %v489
    %619 = vmatprep.subr.bf16.mxu0 0
    %620 = vmatpush1.bf16.msra.mxu0 %v491
    %621 = vmatprep.subr.bf16.mxu0 0
    %622 = vmatpush1.bf16.msra.mxu0 %v492
    %623 = vmatprep.subr.bf16.mxu0 0
    %624 = vmatpush1.bf16.msra.mxu0 %v493
    %625 = vmatprep.subr.bf16.mxu0 0
    %626 = vmatpush1.bf16.msra.mxu0 %v494
    %627 = vmatprep.subr.bf16.mxu0 0
    %628 = vmatpush1.bf16.msra.mxu0 %v495
    %629 = vmatprep.subr.bf16.mxu0 0
    %630 = vmatpush1.bf16.msra.mxu0 %v496
    %631 = vmatprep.subr.bf16.mxu0 0
    %632 = vmatpush1.bf16.msra.mxu0 %v497
    %633 = vmatprep.subr.bf16.mxu0 0
    %634 = vmatpush1.bf16.msra.mxu0 %v498
    %635 = vmatprep.subr.bf16.mxu0 0
    %636 = vmatpush1.bf16.msra.mxu0 %v499
    %637 = vmatprep.subr.bf16.mxu0 0
    %638 = vmatpush1.bf16.msra.mxu0 %v500
    %639 = vmatprep.subr.bf16.mxu0 0
    %640 = vmatpush1.bf16.msra.mxu0 %v501
    %641 = vmatprep.subr.bf16.mxu0 0
    %642 = vmatpush1.bf16.msra.mxu0 %v502
    %643 = vmatprep.subr.bf16.mxu0 0
    %644 = vmatpush1.bf16.msra.mxu0 %v503
    %645 = vmatprep.subr.bf16.mxu0 0
    %646 = vmatpush1.bf16.msra.mxu0 %v504
    %647 = vmatprep.subr.bf16.mxu0 0
    %648 = vmatpush1.bf16.msra.mxu0 %v505
    %649 = vmatprep.subr.bf16.mxu0 0
    %650 = vmatpush1.bf16.msra.mxu0 %v506
    %651 = vmatprep.mubr.bf16.mxu0 %v220
    %652 = vmatmul.mubr.bf16.gmra.mrb[0].mxu0 %v219
    %v653 = vpop.f32.mrb[0].mxu0
    %v654 = vadd.f32 %v194, %v653
    %v655 = vpop.f32.mrb[0].mxu0
    %v656 = vpop.f32.mrb[0].mxu0
    %v657 = vadd.f32 %v194, %v656
    %v658 = vpop.f32.mrb[0].mxu0
    %659 = vdwg.mxu0
    %660 = vmatprep.subr.bf16.mxu0 0
    %661 = vmatpush1.bf16.msra.mxu0 %v507
    %662 = vmatprep.subr.bf16.mxu0 0
    %663 = vmatpush1.bf16.msra.mxu0 %v508
    %664 = vmatprep.subr.bf16.mxu0 0
    %665 = vmatpush1.bf16.msra.mxu0 %v509
    %666 = vmatprep.subr.bf16.mxu0 0
    %667 = vmatpush1.bf16.msra.mxu0 %v510
    %668 = vmatprep.subr.bf16.mxu0 0
    %669 = vmatpush1.bf16.msra.mxu0 %v511
    %670 = vmatprep.subr.bf16.mxu0 0
    %671 = vmatpush1.bf16.msra.mxu0 %v512
    %672 = vmatprep.subr.bf16.mxu0 0
    %673 = vmatpush1.bf16.msra.mxu0 %v513
    %674 = vmatprep.subr.bf16.mxu0 0
    %675 = vmatpush1.bf16.msra.mxu0 %v514
    %676 = vmatprep.subr.bf16.mxu0 0
    %677 = vmatpush1.bf16.msra.mxu0 %v515
    %678 = vmatprep.subr.bf16.mxu0 0
    %679 = vmatpush1.bf16.msra.mxu0 %v516
    %680 = vmatprep.subr.bf16.mxu0 0
    %681 = vmatpush1.bf16.msra.mxu0 %v517
    %682 = vmatprep.subr.bf16.mxu0 0
    %683 = vmatpush1.bf16.msra.mxu0 %v518
    %684 = vmatprep.subr.bf16.mxu0 0
    %685 = vmatpush1.bf16.msra.mxu0 %v519
    %686 = vmatprep.subr.bf16.mxu0 0
    %687 = vmatpush1.bf16.msra.mxu0 %v520
    %688 = vmatprep.subr.bf16.mxu0 0
    %689 = vmatpush1.bf16.msra.mxu0 %v521
    %690 = vmatprep.subr.bf16.mxu0 0
    %691 = vmatpush1.bf16.msra.mxu0 %v522
    %692 = vmatprep.mubr.bf16.mxu0 %v222
    %693 = vmatmul.mubr.bf16.gmra.mrb[0].mxu0 %v221
    %v694 = vpop.f32.mrb[0].mxu0
    %v695 = vadd.f32 %v654, %v694
    %v696 = vpop.f32.mrb[0].mxu0
    %v697 = vpop.f32.mrb[0].mxu0
    %v698 = vadd.f32 %v657, %v697
    %v699 = vpop.f32.mrb[0].mxu0
    %700 = vdwg.mxu0
    %701 = vmatprep.subr.bf16.mxu0 0
    %702 = vmatpush1.bf16.msra.mxu0 %v523
    %703 = vmatprep.subr.bf16.mxu0 0
    %704 = vmatpush1.bf16.msra.mxu0 %v524
    %705 = vmatprep.subr.bf16.mxu0 0
    %706 = vmatpush1.bf16.msra.mxu0 %v525
    %707 = vmatprep.subr.bf16.mxu0 0
    %708 = vmatpush1.bf16.msra.mxu0 %v526
    %709 = vmatprep.subr.bf16.mxu0 0
    %710 = vmatpush1.bf16.msra.mxu0 %v527
    %711 = vmatprep.subr.bf16.mxu0 0
    %712 = vmatpush1.bf16.msra.mxu0 %v528
    %713 = vmatprep.subr.bf16.mxu0 0
    %714 = vmatpush1.bf16.msra.mxu0 %v529
    %715 = vmatprep.subr.bf16.mxu0 0
    %716 = vmatpush1.bf16.msra.mxu0 %v530
    %717 = vmatprep.subr.bf16.mxu0 0
    %718 = vmatpush1.bf16.msra.mxu0 %v531
    %719 = vmatprep.subr.bf16.mxu0 0
    %720 = vmatpush1.bf16.msra.mxu0 %v532
    %721 = vmatprep.subr.bf16.mxu0 0
    %722 = vmatpush1.bf16.msra.mxu0 %v533
    %723 = vmatprep.subr.bf16.mxu0 0
    %724 = vmatpush1.bf16.msra.mxu0 %v534
    %725 = vmatprep.subr.bf16.mxu0 0
    %726 = vmatpush1.bf16.msra.mxu0 %v535
    %727 = vmatprep.subr.bf16.mxu0 0
    %728 = vmatpush1.bf16.msra.mxu0 %v536
    %729 = vmatprep.subr.bf16.mxu0 0
    %730 = vmatpush1.bf16.msra.mxu0 %v537
    %731 = vmatprep.subr.bf16.mxu0 0
    %732 = vmatpush1.bf16.msra.mxu0 %v538
    %733 = vmatprep.mubr.bf16.mxu0 %v224
    %734 = vmatmul.mubr.bf16.gmra.mrb[0].mxu0 %v223
    %v735 = vpop.f32.mrb[0].mxu0
    %v736 = vadd.f32 %v695, %v735
    %v737 = vpop.f32.mrb[0].mxu0
    %v738 = vpop.f32.mrb[0].mxu0
    %v739 = vadd.f32 %v698, %v738
    %v740 = vpop.f32.mrb[0].mxu0
    %741 = vdwg.mxu0
    %742 = vmatprep.subr.bf16.mxu0 0
    %743 = vmatpush1.bf16.msra.mxu0 %v539
    %744 = vmatprep.subr.bf16.mxu0 0
    %745 = vmatpush1.bf16.msra.mxu0 %v540
    %746 = vmatprep.subr.bf16.mxu0 0
    %747 = vmatpush1.bf16.msra.mxu0 %v541
    %748 = vmatprep.subr.bf16.mxu0 0
    %749 = vmatpush1.bf16.msra.mxu0 %v542
    %750 = vmatprep.subr.bf16.mxu0 0
    %751 = vmatpush1.bf16.msra.mxu0 %v543
    %752 = vmatprep.subr.bf16.mxu0 0
    %753 = vmatpush1.bf16.msra.mxu0 %v544
    %754 = vmatprep.subr.bf16.mxu0 0
    %755 = vmatpush1.bf16.msra.mxu0 %v545
    %756 = vmatprep.subr.bf16.mxu0 0
    %757 = vmatpush1.bf16.msra.mxu0 %v546
    %758 = vmatprep.subr.bf16.mxu0 0
    %759 = vmatpush1.bf16.msra.mxu0 %v547
    %760 = vmatprep.subr.bf16.mxu0 0
    %761 = vmatpush1.bf16.msra.mxu0 %v548
    %762 = vmatprep.subr.bf16.mxu0 0
    %763 = vmatpush1.bf16.msra.mxu0 %v549
    %764 = vmatprep.subr.bf16.mxu0 0
    %765 = vmatpush1.bf16.msra.mxu0 %v550
    %766 = vmatprep.subr.bf16.mxu0 0
    %767 = vmatpush1.bf16.msra.mxu0 %v551
    %768 = vmatprep.subr.bf16.mxu0 0
    %769 = vmatpush1.bf16.msra.mxu0 %v552
    %770 = vmatprep.subr.bf16.mxu0 0
    %771 = vmatpush1.bf16.msra.mxu0 %v553
    %772 = vmatprep.subr.bf16.mxu0 0
    %773 = vmatpush1.bf16.msra.mxu0 %v554
    %774 = vmatprep.mubr.bf16.mxu0 %v226
    %775 = vmatmul.mubr.bf16.gmra.mrb[0].mxu0 %v225
    %v776 = vpop.f32.mrb[0].mxu0
    %v777 = vadd.f32 %v736, %v776
    %v778 = vpop.f32.mrb[0].mxu0
    %v779 = vpop.f32.mrb[0].mxu0
    %v780 = vadd.f32 %v739, %v779
    %v781 = vpop.f32.mrb[0].mxu0
    %782 = vdwg.mxu0
    %v783 = vmax.f32 %v777, 0.0
    %v784 = vmax.f32 %v780, 0.0
    %v785 = vld [vmem:[#allocation2] sm:$0xf]
    %v786 = vld [vmem:[#allocation2 + $0x4] sm:$0xf]
    %v787 = vld [vmem:[#allocation2 + $0x8] sm:$0xf]
    %v788 = vld [vmem:[#allocation2 + $0xc] sm:$0xf]
    %v789 = vpack.c.bf16 %v784, %v783
    %v790 = vld [vmem:[%s7 + $0x1] ss:$0 sm:$0xff]
    %v795 = vunpack.c.l.b16 %v785
    %v796 = vunpack.c.l.b16 %v786
    %v797 = vunpack.c.l.b16 %v787
    %v798 = vunpack.c.l.b16 %v788
    %v799 = vpack.c.b16 %v796, %v795
    %v800 = vpack.c.b16 %v798, %v797
    %vm803 = vcmask 261120
    %v805 = vsel %vm803, %v789, 0
    %807 = vmatprep.subr.bf16.mxu0 0
    %808 = vmatpush1.bf16.msra.mxu0 %v799
    %809 = vmatprep.subr.bf16.mxu0 0
    %810 = vmatpush1.bf16.msra.mxu0 %v800
    %811 = vmatprep.subr.bf16.mxu0 0
    %812 = vmatpush1.bf16.msra.mxu0 0
    %813 = vmatprep.subr.bf16.mxu0 0
    %814 = vmatpush1.bf16.msra.mxu0 0
    %815 = vmatprep.subr.bf16.mxu0 0
    %816 = vmatpush1.bf16.msra.mxu0 0
    %817 = vmatprep.subr.bf16.mxu0 0
    %818 = vmatpush1.bf16.msra.mxu0 0
    %819 = vmatprep.subr.bf16.mxu0 0
    %820 = vmatpush1.bf16.msra.mxu0 0
    %821 = vmatprep.subr.bf16.mxu0 0
    %822 = vmatpush1.bf16.msra.mxu0 0
    %823 = vmatprep.subr.bf16.mxu0 0
    %824 = vmatpush1.bf16.msra.mxu0 0
    %825 = vmatprep.subr.bf16.mxu0 0
    %826 = vmatpush1.bf16.msra.mxu0 0
    %827 = vmatprep.subr.bf16.mxu0 0
    %828 = vmatpush1.bf16.msra.mxu0 0
    %829 = vmatprep.subr.bf16.mxu0 0
    %830 = vmatpush1.bf16.msra.mxu0 0
    %831 = vmatprep.subr.bf16.mxu0 0
    %832 = vmatpush1.bf16.msra.mxu0 0
    %833 = vmatprep.subr.bf16.mxu0 0
    %834 = vmatpush1.bf16.msra.mxu0 0
    %835 = vmatprep.subr.bf16.mxu0 0
    %836 = vmatpush1.bf16.msra.mxu0 0
    %837 = vmatprep.subr.bf16.mxu0 0
    %838 = vmatpush1.bf16.msra.mxu0 0
    %839 = vmatprep.mubr.bf16.mxu0 0
    %840 = vmatmul.mubr.bf16.gmra.mrb[0].mxu0 %v805
    %v841 = vpop.f32.mrb[0].mxu0
    %v842 = vadd.f32 %v790, %v841
    %v843 = vpop.f32.mrb[0].mxu0
    %v844 = vpop.f32.mrb[0].mxu0
    %v845 = vadd.f32 %v790, %v844
    %v846 = vpop.f32.mrb[0].mxu0
    %847 = vdwg.mxu0
    %v848 = vmax.f32 %v842, 0.0
    %v849 = vmax.f32 %v845, 0.0
    %v850 = vld [vmem:[%s3] sm:$0xf]
    %v851 = vld [vmem:[%s3 + $0xc] sm:$0xf]
    %v852 = vld [vmem:[%s3 + $0x18] sm:$0xf]
    %v853 = vld [vmem:[%s3 + $0x24] sm:$0xf]
    %v854 = vld [vmem:[%s3 + $0x30] sm:$0xf]
    %v855 = vld [vmem:[%s3 + $0x3c] sm:$0xf]
    %v856 = vld [vmem:[%s3 + $0x48] sm:$0xf]
    %v857 = vld [vmem:[%s3 + $0x54] sm:$0xf]
    %v858 = vpack.c.bf16 %v849, %v848
    %v859 = vld [vmem:[%s7 + $0x2] ss:$0 sm:$0xff]
    %v868 = vunpack.c.l.b16 %v850
    %v869 = vunpack.c.l.b16 %v851
    %v870 = vunpack.c.l.b16 %v852
    %v871 = vunpack.c.l.b16 %v853
    %v872 = vunpack.c.l.b16 %v854
    %v873 = vunpack.c.l.b16 %v855
    %v874 = vunpack.c.l.b16 %v856
    %v875 = vunpack.c.l.b16 %v857
    %v876 = vpack.c.b16 %v869, %v868
    %v877 = vpack.c.b16 %v871, %v870
    %v878 = vpack.c.b16 %v873, %v872
    %v879 = vpack.c.b16 %v875, %v874
    %vm884 = vcmask 523264
    %v886 = vsel %vm884, %v858, 0
    %888 = vmatprep.subr.bf16.mxu0 0
    %889 = vmatpush1.bf16.msra.mxu0 %v876
    %890 = vmatprep.subr.bf16.mxu0 0
    %891 = vmatpush1.bf16.msra.mxu0 %v877
    %892 = vmatprep.subr.bf16.mxu0 0
    %893 = vmatpush1.bf16.msra.mxu0 %v878
    %894 = vmatprep.subr.bf16.mxu0 0
    %895 = vmatpush1.bf16.msra.mxu0 %v879
    %896 = vmatprep.subr.bf16.mxu0 0
    %897 = vmatpush1.bf16.msra.mxu0 0
    %898 = vmatprep.subr.bf16.mxu0 0
    %899 = vmatpush1.bf16.msra.mxu0 0
    %900 = vmatprep.subr.bf16.mxu0 0
    %901 = vmatpush1.bf16.msra.mxu0 0
    %902 = vmatprep.subr.bf16.mxu0 0
    %903 = vmatpush1.bf16.msra.mxu0 0
    %904 = vmatprep.subr.bf16.mxu0 0
    %905 = vmatpush1.bf16.msra.mxu0 0
    %906 = vmatprep.subr.bf16.mxu0 0
    %907 = vmatpush1.bf16.msra.mxu0 0
    %908 = vmatprep.subr.bf16.mxu0 0
    %909 = vmatpush1.bf16.msra.mxu0 0
    %910 = vmatprep.subr.bf16.mxu0 0
    %911 = vmatpush1.bf16.msra.mxu0 0
    %912 = vmatprep.subr.bf16.mxu0 0
    %913 = vmatpush1.bf16.msra.mxu0 0
    %914 = vmatprep.subr.bf16.mxu0 0
    %915 = vmatpush1.bf16.msra.mxu0 0
    %916 = vmatprep.subr.bf16.mxu0 0
    %917 = vmatpush1.bf16.msra.mxu0 0
    %918 = vmatprep.subr.bf16.mxu0 0
    %919 = vmatpush1.bf16.msra.mxu0 0
    %920 = vmatprep.mubr.bf16.mxu0 0
    %921 = vmatmul.mubr.bf16.gmra.mrb[0].mxu0 %v886
    %v922 = vpop.f32.mrb[0].mxu0
    %v923 = vadd.f32 %v859, %v922
    %v924 = vpop.f32.mrb[0].mxu0
    %v925 = vpop.f32.mrb[0].mxu0
    %v926 = vadd.f32 %v859, %v925
    %v927 = vpop.f32.mrb[0].mxu0
    %928 = vdwg.mxu0
    %v929 = vmax.f32 %v923, 0.0
    %v930 = vmax.f32 %v926, 0.0
    %v931 = vld [vmem:[%s4] sm:$0xff]
    %v932 = vld [vmem:[%s4 + $0xc] sm:$0xff]
    %v933 = vld [vmem:[%s4 + $0x18] sm:$0xff]
    %v934 = vld [vmem:[%s4 + $0x24] sm:$0xff]
    %v935 = vld [vmem:[%s4 + $0x30] sm:$0xff]
    %v936 = vld [vmem:[%s4 + $0x3c] sm:$0xff]
    %v937 = vld [vmem:[%s4 + $0x48] sm:$0xff]
    %v938 = vld [vmem:[%s4 + $0x54] sm:$0xff]
    %v939 = vld [vmem:[%s4 + $0x60] sm:$0xff]
    %v940 = vld [vmem:[%s4 + $0x6c] sm:$0xff]
    %v941 = vld [vmem:[%s4 + $0x78] sm:$0xff]
    %v942 = vld [vmem:[%s4 + $0x84] sm:$0xff]
    %v943 = vld [vmem:[%s4 + $0x90] sm:$0xff]
    %v944 = vld [vmem:[%s4 + $0x9c] sm:$0xff]
    %v945 = vld [vmem:[%s4 + $0xa8] sm:$0xff]
    %v946 = vld [vmem:[%s4 + $0xb4] sm:$0xff]
    %v947 = vpack.c.bf16 %v930, %v929
    %s948 = scalar_lea.vmem %s7, 3
    %v949 = vld [vmem:[%s948] ss:$8 sm:$0x3]
    %v951 = vlaneseq
    %v952 = vshrl.u32 %v951, 7
    %v953 = vsub.s32 0, %v952
    %v954 = vrot.slane %v949, %v953
    %v955 = vlaneseq
    %v956 = vshrl.u32 %v955, 7
    %v957 = vsub.s32 1, %v956
    %v958 = vrot.slane %v949, %v957
    %v977 = vunpack.c.l.b16 %v931
    %v978 = vunpack.c.h.b16 %v931
    %v979 = vunpack.c.l.b16 %v932
    %v980 = vunpack.c.h.b16 %v932
    %v981 = vunpack.c.l.b16 %v933
    %v982 = vunpack.c.h.b16 %v933
    %v983 = vunpack.c.l.b16 %v934
    %v984 = vunpack.c.h.b16 %v934
    %v985 = vunpack.c.l.b16 %v935
    %v986 = vunpack.c.h.b16 %v935
    %v987 = vunpack.c.l.b16 %v936
    %v988 = vunpack.c.h.b16 %v936
    %v989 = vunpack.c.l.b16 %v937
    %v990 = vunpack.c.h.b16 %v937
    %v991 = vunpack.c.l.b16 %v938
    %v992 = vunpack.c.h.b16 %v938
    %v993 = vunpack.c.l.b16 %v939
    %v994 = vunpack.c.h.b16 %v939
    %v995 = vunpack.c.l.b16 %v940
    %v996 = vunpack.c.h.b16 %v940
    %v997 = vunpack.c.l.b16 %v941
    %v998 = vunpack.c.h.b16 %v941
    %v999 = vunpack.c.l.b16 %v942
    %v1000 = vunpack.c.h.b16 %v942
    %v1001 = vunpack.c.l.b16 %v943
    %v1002 = vunpack.c.h.b16 %v943
    %v1003 = vunpack.c.l.b16 %v944
    %v1004 = vunpack.c.h.b16 %v944
    %v1005 = vunpack.c.l.b16 %v945
    %v1006 = vunpack.c.h.b16 %v945
    %v1007 = vunpack.c.l.b16 %v946
    %v1008 = vunpack.c.h.b16 %v946
    %v1009 = vpack.c.b16 %v979, %v977
    %v1010 = vpack.c.b16 %v980, %v978
    %v1011 = vpack.c.b16 %v983, %v981
    %v1012 = vpack.c.b16 %v984, %v982
    %v1013 = vpack.c.b16 %v987, %v985
    %v1014 = vpack.c.b16 %v988, %v986
    %v1015 = vpack.c.b16 %v991, %v989
    %v1016 = vpack.c.b16 %v992, %v990
    %v1017 = vpack.c.b16 %v995, %v993
    %v1018 = vpack.c.b16 %v996, %v994
    %v1019 = vpack.c.b16 %v999, %v997
    %v1020 = vpack.c.b16 %v1000, %v998
    %v1021 = vpack.c.b16 %v1003, %v1001
    %v1022 = vpack.c.b16 %v1004, %v1002
    %v1023 = vpack.c.b16 %v1007, %v1005
    %v1024 = vpack.c.b16 %v1008, %v1006
    %1041 = vmatprep.subr.bf16.mxu0 %v1010
    %1042 = vmatpush1.bf16.msra.mxu0 %v1009
    %1043 = vmatprep.subr.bf16.mxu0 %v1012
    %1044 = vmatpush1.bf16.msra.mxu0 %v1011
    %1045 = vmatprep.subr.bf16.mxu0 %v1014
    %1046 = vmatpush1.bf16.msra.mxu0 %v1013
    %1047 = vmatprep.subr.bf16.mxu0 %v1016
    %1048 = vmatpush1.bf16.msra.mxu0 %v1015
    %1049 = vmatprep.subr.bf16.mxu0 %v1018
    %1050 = vmatpush1.bf16.msra.mxu0 %v1017
    %1051 = vmatprep.subr.bf16.mxu0 %v1020
    %1052 = vmatpush1.bf16.msra.mxu0 %v1019
    %1053 = vmatprep.subr.bf16.mxu0 %v1022
    %1054 = vmatpush1.bf16.msra.mxu0 %v1021
    %1055 = vmatprep.subr.bf16.mxu0 %v1024
    %1056 = vmatpush1.bf16.msra.mxu0 %v1023
    %1057 = vmatprep.subr.bf16.mxu0 0
    %1058 = vmatpush1.bf16.msra.mxu0 0
    %1059 = vmatprep.subr.bf16.mxu0 0
    %1060 = vmatpush1.bf16.msra.mxu0 0
    %1061 = vmatprep.subr.bf16.mxu0 0
    %1062 = vmatpush1.bf16.msra.mxu0 0
    %1063 = vmatprep.subr.bf16.mxu0 0
    %1064 = vmatpush1.bf16.msra.mxu0 0
    %1065 = vmatprep.subr.bf16.mxu0 0
    %1066 = vmatpush1.bf16.msra.mxu0 0
    %1067 = vmatprep.subr.bf16.mxu0 0
    %1068 = vmatpush1.bf16.msra.mxu0 0
    %1069 = vmatprep.subr.bf16.mxu0 0
    %1070 = vmatpush1.bf16.msra.mxu0 0
    %1071 = vmatprep.subr.bf16.mxu0 0
    %1072 = vmatpush1.bf16.msra.mxu0 0
    %1073 = vmatprep.mubr.bf16.mxu0 0
    %1074 = vmatmul.mubr.bf16.gmra.mrb[0].mxu0 %v947
    %v1075 = vpop.f32.mrb[0].mxu0
    %v1076 = vadd.f32 %v954, %v1075
    %v1077 = vpop.f32.mrb[0].mxu0
    %v1078 = vadd.f32 %v958, %v1077
    %v1079 = vpop.f32.mrb[0].mxu0
    %v1080 = vadd.f32 %v954, %v1079
    %v1081 = vpop.f32.mrb[0].mxu0
    %v1082 = vadd.f32 %v958, %v1081
    %1083 = vdwg.mxu0
    %v1084 = vmax.f32 %v1076, 0.0
    %v1085 = vmax.f32 %v1078, 0.0
    %v1086 = vmax.f32 %v1080, 0.0
    %v1087 = vmax.f32 %v1082, 0.0
    %v1088 = vld [vmem:[%s5] sm:$0xff]
    %v1089 = vld [vmem:[%s5 + $0x8] sm:$0xff]
    %v1090 = vld [vmem:[%s5 + $0x14] sm:$0xff]
    %v1091 = vld [vmem:[%s5 + $0x1c] sm:$0xff]
    %v1092 = vld [vmem:[%s5 + $0x28] sm:$0xff]
    %v1093 = vld [vmem:[%s5 + $0x30] sm:$0xff]
    %v1094 = vld [vmem:[%s5 + $0x3c] sm:$0xff]
    %v1095 = vld [vmem:[%s5 + $0x44] sm:$0xff]
    %v1096 = vld [vmem:[%s5 + $0x50] sm:$0xff]
    %v1097 = vld [vmem:[%s5 + $0x58] sm:$0xff]
    %v1098 = vld [vmem:[%s5 + $0x64] sm:$0xff]
    %v1099 = vld [vmem:[%s5 + $0x6c] sm:$0xff]
    %v1100 = vld [vmem:[%s5 + $0x78] sm:$0xff]
    %v1101 = vld [vmem:[%s5 + $0x80] sm:$0xff]
    %v1102 = vld [vmem:[%s5 + $0x8c] sm:$0xff]
    %v1103 = vld [vmem:[%s5 + $0x94] sm:$0xff]
    %v1104 = vld [vmem:[%s5 + $0xa0] sm:$0xff]
    %v1105 = vld [vmem:[%s5 + $0xa8] sm:$0xff]
    %v1106 = vld [vmem:[%s5 + $0xb4] sm:$0xff]
    %v1107 = vld [vmem:[%s5 + $0xbc] sm:$0xff]
    %v1108 = vld [vmem:[%s5 + $0xc8] sm:$0xff]
    %v1109 = vld [vmem:[%s5 + $0xd0] sm:$0xff]
    %v1110 = vld [vmem:[%s5 + $0xdc] sm:$0xff]
    %v1111 = vld [vmem:[%s5 + $0xe4] sm:$0xff]
    %v1112 = vld [vmem:[%s5 + $0xf0] sm:$0xff]
    %v1113 = vld [vmem:[%s5 + $0xf8] sm:$0xff]
    %v1114 = vld [vmem:[%s5 + $0x104] sm:$0xff]
    %v1115 = vld [vmem:[%s5 + $0x10c] sm:$0xff]
    %v1116 = vld [vmem:[%s5 + $0x118] sm:$0xff]
    %v1117 = vld [vmem:[%s5 + $0x120] sm:$0xff]
    %v1118 = vld [vmem:[%s5 + $0x12c] sm:$0xff]
    %v1119 = vld [vmem:[%s5 + $0x134] sm:$0xff]
    %v1120 = vld [vmem:[%s5 + $0x140] sm:$0xff]
    %v1121 = vld [vmem:[%s5 + $0x148] sm:$0xff]
    %v1122 = vld [vmem:[%s5 + $0x154] sm:$0xff]
    %v1123 = vld [vmem:[%s5 + $0x15c] sm:$0xff]
    %v1124 = vld [vmem:[%s5 + $0x168] sm:$0xff]
    %v1125 = vld [vmem:[%s5 + $0x170] sm:$0xff]
    %v1126 = vld [vmem:[%s5 + $0x17c] sm:$0xff]
    %v1127 = vld [vmem:[%s5 + $0x184] sm:$0xff]
    %v1128 = vld [vmem:[%s5 + $0x190] sm:$0xff]
    %v1129 = vld [vmem:[%s5 + $0x198] sm:$0xff]
    %v1130 = vld [vmem:[%s5 + $0x1a4] sm:$0xff]
    %v1131 = vld [vmem:[%s5 + $0x1ac] sm:$0xff]
    %v1132 = vld [vmem:[%s5 + $0x1b8] sm:$0xff]
    %v1133 = vld [vmem:[%s5 + $0x1c0] sm:$0xff]
    %v1134 = vld [vmem:[%s5 + $0x1cc] sm:$0xff]
    %v1135 = vld [vmem:[%s5 + $0x1d4] sm:$0xff]
    %v1136 = vld [vmem:[%s5 + $0x1e0] sm:$0xff]
    %v1137 = vld [vmem:[%s5 + $0x1e8] sm:$0xff]
    %v1138 = vld [vmem:[%s5 + $0x1f4] sm:$0xff]
    %v1139 = vld [vmem:[%s5 + $0x1fc] sm:$0xff]
    %v1140 = vld [vmem:[%s5 + $0x208] sm:$0xff]
    %v1141 = vld [vmem:[%s5 + $0x210] sm:$0xff]
    %v1142 = vld [vmem:[%s5 + $0x21c] sm:$0xff]
    %v1143 = vld [vmem:[%s5 + $0x224] sm:$0xff]
    %v1144 = vld [vmem:[%s5 + $0x230] sm:$0xff]
    %v1145 = vld [vmem:[%s5 + $0x238] sm:$0xff]
    %v1146 = vld [vmem:[%s5 + $0x244] sm:$0xff]
    %v1147 = vld [vmem:[%s5 + $0x24c] sm:$0xff]
    %v1148 = vld [vmem:[%s5 + $0x258] sm:$0xff]
    %v1149 = vld [vmem:[%s5 + $0x260] sm:$0xff]
    %v1150 = vld [vmem:[%s5 + $0x26c] sm:$0xff]
    %v1151 = vld [vmem:[%s5 + $0x274] sm:$0xff]
    %v1152 = vpack.c.bf16 %v1086, %v1084
    %v1153 = vpack.c.bf16 %v1087, %v1085
    %s1154 = scalar_lea.vmem %s7, 4
    %v1155 = vld [vmem:[%s1154] ss:$8 sm:$0xf]
    %v1157 = vlaneseq
    %v1158 = vshrl.u32 %v1157, 7
    %v1159 = vsub.s32 0, %v1158
    %v1160 = vrot.slane %v1155, %v1159
    %v1161 = vlaneseq
    %v1162 = vshrl.u32 %v1161, 7
    %v1163 = vsub.s32 1, %v1162
    %v1164 = vrot.slane %v1155, %v1163
    %v1165 = vlaneseq
    %v1166 = vshrl.u32 %v1165, 7
    %v1167 = vsub.s32 2, %v1166
    %v1168 = vrot.slane %v1155, %v1167
    %v1169 = vlaneseq
    %v1170 = vshrl.u32 %v1169, 7
    %v1171 = vsub.s32 3, %v1170
    %v1172 = vrot.slane %v1155, %v1171
    %v1241 = vunpack.c.l.b16 %v1088
    %v1242 = vunpack.c.h.b16 %v1088
    %v1243 = vunpack.c.l.b16 %v1089
    %v1244 = vunpack.c.h.b16 %v1089
    %v1245 = vunpack.c.l.b16 %v1090
    %v1246 = vunpack.c.h.b16 %v1090
    %v1247 = vunpack.c.l.b16 %v1091
    %v1248 = vunpack.c.h.b16 %v1091
    %v1249 = vunpack.c.l.b16 %v1092
    %v1250 = vunpack.c.h.b16 %v1092
    %v1251 = vunpack.c.l.b16 %v1093
    %v1252 = vunpack.c.h.b16 %v1093
    %v1253 = vunpack.c.l.b16 %v1094
    %v1254 = vunpack.c.h.b16 %v1094
    %v1255 = vunpack.c.l.b16 %v1095
    %v1256 = vunpack.c.h.b16 %v1095
    %v1257 = vunpack.c.l.b16 %v1096
    %v1258 = vunpack.c.h.b16 %v1096
    %v1259 = vunpack.c.l.b16 %v1097
    %v1260 = vunpack.c.h.b16 %v1097
    %v1261 = vunpack.c.l.b16 %v1098
    %v1262 = vunpack.c.h.b16 %v1098
    %v1263 = vunpack.c.l.b16 %v1099
    %v1264 = vunpack.c.h.b16 %v1099
    %v1265 = vunpack.c.l.b16 %v1100
    %v1266 = vunpack.c.h.b16 %v1100
    %v1267 = vunpack.c.l.b16 %v1101
    %v1268 = vunpack.c.h.b16 %v1101
    %v1269 = vunpack.c.l.b16 %v1102
    %v1270 = vunpack.c.h.b16 %v1102
    %v1271 = vunpack.c.l.b16 %v1103
    %v1272 = vunpack.c.h.b16 %v1103
    %v1273 = vunpack.c.l.b16 %v1104
    %v1274 = vunpack.c.h.b16 %v1104
    %v1275 = vunpack.c.l.b16 %v1105
    %v1276 = vunpack.c.h.b16 %v1105
    %v1277 = vunpack.c.l.b16 %v1106
    %v1278 = vunpack.c.h.b16 %v1106
    %v1279 = vunpack.c.l.b16 %v1107
    %v1280 = vunpack.c.h.b16 %v1107
    %v1281 = vunpack.c.l.b16 %v1108
    %v1282 = vunpack.c.h.b16 %v1108
    %v1283 = vunpack.c.l.b16 %v1109
    %v1284 = vunpack.c.h.b16 %v1109
    %v1285 = vunpack.c.l.b16 %v1110
    %v1286 = vunpack.c.h.b16 %v1110
    %v1287 = vunpack.c.l.b16 %v1111
    %v1288 = vunpack.c.h.b16 %v1111
    %v1289 = vunpack.c.l.b16 %v1112
    %v1290 = vunpack.c.h.b16 %v1112
    %v1291 = vunpack.c.l.b16 %v1113
    %v1292 = vunpack.c.h.b16 %v1113
    %v1293 = vunpack.c.l.b16 %v1114
    %v1294 = vunpack.c.h.b16 %v1114
    %v1295 = vunpack.c.l.b16 %v1115
    %v1296 = vunpack.c.h.b16 %v1115
    %v1297 = vunpack.c.l.b16 %v1116
    %v1298 = vunpack.c.h.b16 %v1116
    %v1299 = vunpack.c.l.b16 %v1117
    %v1300 = vunpack.c.h.b16 %v1117
    %v1301 = vunpack.c.l.b16 %v1118
    %v1302 = vunpack.c.h.b16 %v1118
    %v1303 = vunpack.c.l.b16 %v1119
    %v1304 = vunpack.c.h.b16 %v1119
    %v1305 = vunpack.c.l.b16 %v1120
    %v1306 = vunpack.c.h.b16 %v1120
    %v1307 = vunpack.c.l.b16 %v1121
    %v1308 = vunpack.c.h.b16 %v1121
    %v1309 = vunpack.c.l.b16 %v1122
    %v1310 = vunpack.c.h.b16 %v1122
    %v1311 = vunpack.c.l.b16 %v1123
    %v1312 = vunpack.c.h.b16 %v1123
    %v1313 = vunpack.c.l.b16 %v1124
    %v1314 = vunpack.c.h.b16 %v1124
    %v1315 = vunpack.c.l.b16 %v1125
    %v1316 = vunpack.c.h.b16 %v1125
    %v1317 = vunpack.c.l.b16 %v1126
    %v1318 = vunpack.c.h.b16 %v1126
    %v1319 = vunpack.c.l.b16 %v1127
    %v1320 = vunpack.c.h.b16 %v1127
    %v1321 = vunpack.c.l.b16 %v1128
    %v1322 = vunpack.c.h.b16 %v1128
    %v1323 = vunpack.c.l.b16 %v1129
    %v1324 = vunpack.c.h.b16 %v1129
    %v1325 = vunpack.c.l.b16 %v1130
    %v1326 = vunpack.c.h.b16 %v1130
    %v1327 = vunpack.c.l.b16 %v1131
    %v1328 = vunpack.c.h.b16 %v1131
    %v1329 = vunpack.c.l.b16 %v1132
    %v1330 = vunpack.c.h.b16 %v1132
    %v1331 = vunpack.c.l.b16 %v1133
    %v1332 = vunpack.c.h.b16 %v1133
    %v1333 = vunpack.c.l.b16 %v1134
    %v1334 = vunpack.c.h.b16 %v1134
    %v1335 = vunpack.c.l.b16 %v1135
    %v1336 = vunpack.c.h.b16 %v1135
    %v1337 = vunpack.c.l.b16 %v1136
    %v1338 = vunpack.c.h.b16 %v1136
    %v1339 = vunpack.c.l.b16 %v1137
    %v1340 = vunpack.c.h.b16 %v1137
    %v1341 = vunpack.c.l.b16 %v1138
    %v1342 = vunpack.c.h.b16 %v1138
    %v1343 = vunpack.c.l.b16 %v1139
    %v1344 = vunpack.c.h.b16 %v1139
    %v1345 = vunpack.c.l.b16 %v1140
    %v1346 = vunpack.c.h.b16 %v1140
    %v1347 = vunpack.c.l.b16 %v1141
    %v1348 = vunpack.c.h.b16 %v1141
    %v1349 = vunpack.c.l.b16 %v1142
    %v1350 = vunpack.c.h.b16 %v1142
    %v1351 = vunpack.c.l.b16 %v1143
    %v1352 = vunpack.c.h.b16 %v1143
    %v1353 = vunpack.c.l.b16 %v1144
    %v1354 = vunpack.c.h.b16 %v1144
    %v1355 = vunpack.c.l.b16 %v1145
    %v1356 = vunpack.c.h.b16 %v1145
    %v1357 = vunpack.c.l.b16 %v1146
    %v1358 = vunpack.c.h.b16 %v1146
    %v1359 = vunpack.c.l.b16 %v1147
    %v1360 = vunpack.c.h.b16 %v1147
    %v1361 = vunpack.c.l.b16 %v1148
    %v1362 = vunpack.c.h.b16 %v1148
    %v1363 = vunpack.c.l.b16 %v1149
    %v1364 = vunpack.c.h.b16 %v1149
    %v1365 = vunpack.c.l.b16 %v1150
    %v1366 = vunpack.c.h.b16 %v1150
    %v1367 = vunpack.c.l.b16 %v1151
    %v1368 = vunpack.c.h.b16 %v1151
    %v1369 = vpack.c.b16 %v1245, %v1241
    %v1370 = vpack.c.b16 %v1246, %v1242
    %v1371 = vpack.c.b16 %v1247, %v1243
    %v1372 = vpack.c.b16 %v1248, %v1244
    %v1373 = vpack.c.b16 %v1253, %v1249
    %v1374 = vpack.c.b16 %v1254, %v1250
    %v1375 = vpack.c.b16 %v1255, %v1251
    %v1376 = vpack.c.b16 %v1256, %v1252
    %v1377 = vpack.c.b16 %v1261, %v1257
    %v1378 = vpack.c.b16 %v1262, %v1258
    %v1379 = vpack.c.b16 %v1263, %v1259
    %v1380 = vpack.c.b16 %v1264, %v1260
    %v1381 = vpack.c.b16 %v1269, %v1265
    %v1382 = vpack.c.b16 %v1270, %v1266
    %v1383 = vpack.c.b16 %v1271, %v1267
    %v1384 = vpack.c.b16 %v1272, %v1268
    %v1385 = vpack.c.b16 %v1277, %v1273
    %v1386 = vpack.c.b16 %v1278, %v1274
    %v1387 = vpack.c.b16 %v1279, %v1275
    %v1388 = vpack.c.b16 %v1280, %v1276
    %v1389 = vpack.c.b16 %v1285, %v1281
    %v1390 = vpack.c.b16 %v1286, %v1282
    %v1391 = vpack.c.b16 %v1287, %v1283
    %v1392 = vpack.c.b16 %v1288, %v1284
    %v1393 = vpack.c.b16 %v1293, %v1289
    %v1394 = vpack.c.b16 %v1294, %v1290
    %v1395 = vpack.c.b16 %v1295, %v1291
    %v1396 = vpack.c.b16 %v1296, %v1292
    %v1397 = vpack.c.b16 %v1301, %v1297
    %v1398 = vpack.c.b16 %v1302, %v1298
    %v1399 = vpack.c.b16 %v1303, %v1299
    %v1400 = vpack.c.b16 %v1304, %v1300
    %v1401 = vpack.c.b16 %v1309, %v1305
    %v1402 = vpack.c.b16 %v1310, %v1306
    %v1403 = vpack.c.b16 %v1311, %v1307
    %v1404 = vpack.c.b16 %v1312, %v1308
    %v1405 = vpack.c.b16 %v1317, %v1313
    %v1406 = vpack.c.b16 %v1318, %v1314
    %v1407 = vpack.c.b16 %v1319, %v1315
    %v1408 = vpack.c.b16 %v1320, %v1316
    %v1409 = vpack.c.b16 %v1325, %v1321
    %v1410 = vpack.c.b16 %v1326, %v1322
    %v1411 = vpack.c.b16 %v1327, %v1323
    %v1412 = vpack.c.b16 %v1328, %v1324
    %v1413 = vpack.c.b16 %v1333, %v1329
    %v1414 = vpack.c.b16 %v1334, %v1330
    %v1415 = vpack.c.b16 %v1335, %v1331
    %v1416 = vpack.c.b16 %v1336, %v1332
    %v1417 = vpack.c.b16 %v1341, %v1337
    %v1418 = vpack.c.b16 %v1342, %v1338
    %v1419 = vpack.c.b16 %v1343, %v1339
    %v1420 = vpack.c.b16 %v1344, %v1340
    %v1421 = vpack.c.b16 %v1349, %v1345
    %v1422 = vpack.c.b16 %v1350, %v1346
    %v1423 = vpack.c.b16 %v1351, %v1347
    %v1424 = vpack.c.b16 %v1352, %v1348
    %v1425 = vpack.c.b16 %v1357, %v1353
    %v1426 = vpack.c.b16 %v1358, %v1354
    %v1427 = vpack.c.b16 %v1359, %v1355
    %v1428 = vpack.c.b16 %v1360, %v1356
    %v1429 = vpack.c.b16 %v1365, %v1361
    %v1430 = vpack.c.b16 %v1366, %v1362
    %v1431 = vpack.c.b16 %v1367, %v1363
    %v1432 = vpack.c.b16 %v1368, %v1364
    %1497 = vmatprep.subr.bf16.mxu0 %v1370
    %1498 = vmatpush1.bf16.msra.mxu0 %v1369
    %1499 = vmatprep.subr.bf16.mxu0 %v1374
    %1500 = vmatpush1.bf16.msra.mxu0 %v1373
    %1501 = vmatprep.subr.bf16.mxu0 %v1378
    %1502 = vmatpush1.bf16.msra.mxu0 %v1377
    %1503 = vmatprep.subr.bf16.mxu0 %v1382
    %1504 = vmatpush1.bf16.msra.mxu0 %v1381
    %1505 = vmatprep.subr.bf16.mxu0 %v1386
    %1506 = vmatpush1.bf16.msra.mxu0 %v1385
    %1507 = vmatprep.subr.bf16.mxu0 %v1390
    %1508 = vmatpush1.bf16.msra.mxu0 %v1389
    %1509 = vmatprep.subr.bf16.mxu0 %v1394
    %1510 = vmatpush1.bf16.msra.mxu0 %v1393
    %1511 = vmatprep.subr.bf16.mxu0 %v1398
    %1512 = vmatpush1.bf16.msra.mxu0 %v1397
    %1513 = vmatprep.subr.bf16.mxu0 %v1402
    %1514 = vmatpush1.bf16.msra.mxu0 %v1401
    %1515 = vmatprep.subr.bf16.mxu0 %v1406
    %1516 = vmatpush1.bf16.msra.mxu0 %v1405
    %1517 = vmatprep.subr.bf16.mxu0 %v1410
    %1518 = vmatpush1.bf16.msra.mxu0 %v1409
    %1519 = vmatprep.subr.bf16.mxu0 %v1414
    %1520 = vmatpush1.bf16.msra.mxu0 %v1413
    %1521 = vmatprep.subr.bf16.mxu0 %v1418
    %1522 = vmatpush1.bf16.msra.mxu0 %v1417
    %1523 = vmatprep.subr.bf16.mxu0 %v1422
    %1524 = vmatpush1.bf16.msra.mxu0 %v1421
    %1525 = vmatprep.subr.bf16.mxu0 %v1426
    %1526 = vmatpush1.bf16.msra.mxu0 %v1425
    %1527 = vmatprep.subr.bf16.mxu0 %v1430
    %1528 = vmatpush1.bf16.msra.mxu0 %v1429
    %1529 = vmatprep.mubr.bf16.mxu0 %v1153
    %1530 = vmatmul.mubr.bf16.gmra.mrb[0].mxu0 %v1152
    %v1531 = vpop.f32.mrb[0].mxu0
    %v1532 = vadd.f32 %v1160, %v1531
    %v1533 = vpop.f32.mrb[0].mxu0
    %v1534 = vadd.f32 %v1164, %v1533
    %v1535 = vpop.f32.mrb[0].mxu0
    %v1536 = vadd.f32 %v1160, %v1535
    %v1537 = vpop.f32.mrb[0].mxu0
    %v1538 = vadd.f32 %v1164, %v1537
    %1539 = vdwg.mxu0
    %1540 = vmatprep.subr.bf16.mxu0 %v1372
    %1541 = vmatpush1.bf16.msra.mxu0 %v1371
    %1542 = vmatprep.subr.bf16.mxu0 %v1376
    %1543 = vmatpush1.bf16.msra.mxu0 %v1375
    %1544 = vmatprep.subr.bf16.mxu0 %v1380
    %1545 = vmatpush1.bf16.msra.mxu0 %v1379
    %1546 = vmatprep.subr.bf16.mxu0 %v1384
    %1547 = vmatpush1.bf16.msra.mxu0 %v1383
    %1548 = vmatprep.subr.bf16.mxu0 %v1388
    %1549 = vmatpush1.bf16.msra.mxu0 %v1387
    %1550 = vmatprep.subr.bf16.mxu0 %v1392
    %1551 = vmatpush1.bf16.msra.mxu0 %v1391
    %1552 = vmatprep.subr.bf16.mxu0 %v1396
    %1553 = vmatpush1.bf16.msra.mxu0 %v1395
    %1554 = vmatprep.subr.bf16.mxu0 %v1400
    %1555 = vmatpush1.bf16.msra.mxu0 %v1399
    %1556 = vmatprep.subr.bf16.mxu0 %v1404
    %1557 = vmatpush1.bf16.msra.mxu0 %v1403
    %1558 = vmatprep.subr.bf16.mxu0 %v1408
    %1559 = vmatpush1.bf16.msra.mxu0 %v1407
    %1560 = vmatprep.subr.bf16.mxu0 %v1412
    %1561 = vmatpush1.bf16.msra.mxu0 %v1411
    %1562 = vmatprep.subr.bf16.mxu0 %v1416
    %1563 = vmatpush1.bf16.msra.mxu0 %v1415
    %1564 = vmatprep.subr.bf16.mxu0 %v1420
    %1565 = vmatpush1.bf16.msra.mxu0 %v1419
    %1566 = vmatprep.subr.bf16.mxu0 %v1424
    %1567 = vmatpush1.bf16.msra.mxu0 %v1423
    %1568 = vmatprep.subr.bf16.mxu0 %v1428
    %1569 = vmatpush1.bf16.msra.mxu0 %v1427
    %1570 = vmatprep.subr.bf16.mxu0 %v1432
    %1571 = vmatpush1.bf16.msra.mxu0 %v1431
    %1572 = vmatprep.mubr.bf16.mxu0 %v1153
    %1573 = vmatmul.mubr.bf16.gmra.mrb[0].mxu0 %v1152
    %v1574 = vpop.f32.mrb[0].mxu0
    %v1575 = vadd.f32 %v1168, %v1574
    %v1576 = vpop.f32.mrb[0].mxu0
    %v1577 = vadd.f32 %v1172, %v1576
    %v1578 = vpop.f32.mrb[0].mxu0
    %v1579 = vadd.f32 %v1168, %v1578
    %v1580 = vpop.f32.mrb[0].mxu0
    %v1581 = vadd.f32 %v1172, %v1580
    %1582 = vdwg.mxu0
    %v1583 = vmax.f32 %v1532, 0.0
    %v1584 = vmax.f32 %v1534, 0.0
    %v1585 = vmax.f32 %v1575, 0.0
    %v1586 = vmax.f32 %v1577, 0.0
    %v1587 = vmax.f32 %v1536, 0.0
    %v1588 = vmax.f32 %v1538, 0.0
    %v1589 = vmax.f32 %v1579, 0.0
    %v1590 = vmax.f32 %v1581, 0.0
    %v1591 = vld [vmem:[#allocation4] sm:$0xff]
    %v1592 = vld [vmem:[#allocation4 + $0x8] sm:$0xff]
    %v1593 = vld [vmem:[#allocation4 + $0x10] sm:$0xff]
    %v1594 = vld [vmem:[#allocation4 + $0x18] sm:$0xff]
    %v1595 = vld [vmem:[#allocation4 + $0x20] sm:$0xff]
    %v1596 = vld [vmem:[#allocation4 + $0x28] sm:$0xff]
    %v1597 = vld [vmem:[#allocation4 + $0x30] sm:$0xff]
    %v1598 = vld [vmem:[#allocation4 + $0x38] sm:$0xff]
    %v1599 = vld [vmem:[#allocation4 + $0x40] sm:$0xff]
    %v1600 = vld [vmem:[#allocation4 + $0x48] sm:$0xff]
    %v1601 = vld [vmem:[#allocation4 + $0x50] sm:$0xff]
    %v1602 = vld [vmem:[#allocation4 + $0x58] sm:$0xff]
    %v1603 = vld [vmem:[#allocation4 + $0x60] sm:$0xff]
    %v1604 = vld [vmem:[#allocation4 + $0x68] sm:$0xff]
    %v1605 = vld [vmem:[#allocation4 + $0x70] sm:$0xff]
    %v1606 = vld [vmem:[#allocation4 + $0x78] sm:$0xff]
    %v1607 = vld [vmem:[#allocation4 + $0x80] sm:$0xff]
    %v1608 = vld [vmem:[#allocation4 + $0x88] sm:$0xff]
    %v1609 = vld [vmem:[#allocation4 + $0x90] sm:$0xff]
    %v1610 = vld [vmem:[#allocation4 + $0x98] sm:$0xff]
    %v1611 = vld [vmem:[#allocation4 + $0xa0] sm:$0xff]
    %v1612 = vld [vmem:[#allocation4 + $0xa8] sm:$0xff]
    %v1613 = vld [vmem:[#allocation4 + $0xb0] sm:$0xff]
    %v1614 = vld [vmem:[#allocation4 + $0xb8] sm:$0xff]
    %v1615 = vld [vmem:[#allocation4 + $0xc0] sm:$0xff]
    %v1616 = vld [vmem:[#allocation4 + $0xc8] sm:$0xff]
    %v1617 = vld [vmem:[#allocation4 + $0xd0] sm:$0xff]
    %v1618 = vld [vmem:[#allocation4 + $0xd8] sm:$0xff]
    %v1619 = vld [vmem:[#allocation4 + $0xe0] sm:$0xff]
    %v1620 = vld [vmem:[#allocation4 + $0xe8] sm:$0xff]
    %v1621 = vld [vmem:[#allocation4 + $0xf0] sm:$0xff]
    %v1622 = vld [vmem:[#allocation4 + $0xf8] sm:$0xff]
    %v1623 = vld [vmem:[#allocation4 + $0x100] sm:$0xff]
    %v1624 = vld [vmem:[#allocation4 + $0x108] sm:$0xff]
    %v1625 = vld [vmem:[#allocation4 + $0x110] sm:$0xff]
    %v1626 = vld [vmem:[#allocation4 + $0x118] sm:$0xff]
    %v1627 = vld [vmem:[#allocation4 + $0x120] sm:$0xff]
    %v1628 = vld [vmem:[#allocation4 + $0x128] sm:$0xff]
    %v1629 = vld [vmem:[#allocation4 + $0x130] sm:$0xff]
    %v1630 = vld [vmem:[#allocation4 + $0x138] sm:$0xff]
    %v1631 = vld [vmem:[#allocation4 + $0x140] sm:$0xff]
    %v1632 = vld [vmem:[#allocation4 + $0x148] sm:$0xff]
    %v1633 = vld [vmem:[#allocation4 + $0x150] sm:$0xff]
    %v1634 = vld [vmem:[#allocation4 + $0x158] sm:$0xff]
    %v1635 = vld [vmem:[#allocation4 + $0x160] sm:$0xff]
    %v1636 = vld [vmem:[#allocation4 + $0x168] sm:$0xff]
    %v1637 = vld [vmem:[#allocation4 + $0x170] sm:$0xff]
    %v1638 = vld [vmem:[#allocation4 + $0x178] sm:$0xff]
    %v1639 = vld [vmem:[#allocation4 + $0x180] sm:$0xff]
    %v1640 = vld [vmem:[#allocation4 + $0x188] sm:$0xff]
    %v1641 = vld [vmem:[#allocation4 + $0x190] sm:$0xff]
    %v1642 = vld [vmem:[#allocation4 + $0x198] sm:$0xff]
    %v1643 = vld [vmem:[#allocation4 + $0x1a0] sm:$0xff]
    %v1644 = vld [vmem:[#allocation4 + $0x1a8] sm:$0xff]
    %v1645 = vld [vmem:[#allocation4 + $0x1b0] sm:$0xff]
    %v1646 = vld [vmem:[#allocation4 + $0x1b8] sm:$0xff]
    %v1647 = vld [vmem:[#allocation4 + $0x1c0] sm:$0xff]
    %v1648 = vld [vmem:[#allocation4 + $0x1c8] sm:$0xff]
    %v1649 = vld [vmem:[#allocation4 + $0x1d0] sm:$0xff]
    %v1650 = vld [vmem:[#allocation4 + $0x1d8] sm:$0xff]
    %v1651 = vld [vmem:[#allocation4 + $0x1e0] sm:$0xff]
    %v1652 = vld [vmem:[#allocation4 + $0x1e8] sm:$0xff]
    %v1653 = vld [vmem:[#allocation4 + $0x1f0] sm:$0xff]
    %v1654 = vld [vmem:[#allocation4 + $0x1f8] sm:$0xff]
    %v1655 = vpack.c.bf16 %v1587, %v1583
    %v1656 = vpack.c.bf16 %v1588, %v1584
    %v1657 = vpack.c.bf16 %v1589, %v1585
    %v1658 = vpack.c.bf16 %v1590, %v1586
    %s1659 = scalar_lea.vmem %s7, 5
    %v1660 = vld [vmem:[%s1659] ss:$8 sm:$0x3]
    %v1662 = vlaneseq
    %v1663 = vshrl.u32 %v1662, 7
    %v1664 = vsub.s32 0, %v1663
    %v1665 = vrot.slane %v1660, %v1664
    %v1666 = vlaneseq
    %v1667 = vshrl.u32 %v1666, 7
    %v1668 = vsub.s32 1, %v1667
    %v1669 = vrot.slane %v1660, %v1668
    %v1736 = vunpack.c.l.b16 %v1591
    %v1737 = vunpack.c.h.b16 %v1591
    %v1738 = vunpack.c.l.b16 %v1592
    %v1739 = vunpack.c.h.b16 %v1592
    %v1740 = vunpack.c.l.b16 %v1593
    %v1741 = vunpack.c.h.b16 %v1593
    %v1742 = vunpack.c.l.b16 %v1594
    %v1743 = vunpack.c.h.b16 %v1594
    %v1744 = vunpack.c.l.b16 %v1595
    %v1745 = vunpack.c.h.b16 %v1595
    %v1746 = vunpack.c.l.b16 %v1596
    %v1747 = vunpack.c.h.b16 %v1596
    %v1748 = vunpack.c.l.b16 %v1597
    %v1749 = vunpack.c.h.b16 %v1597
    %v1750 = vunpack.c.l.b16 %v1598
    %v1751 = vunpack.c.h.b16 %v1598
    %v1752 = vunpack.c.l.b16 %v1599
    %v1753 = vunpack.c.h.b16 %v1599
    %v1754 = vunpack.c.l.b16 %v1600
    %v1755 = vunpack.c.h.b16 %v1600
    %v1756 = vunpack.c.l.b16 %v1601
    %v1757 = vunpack.c.h.b16 %v1601
    %v1758 = vunpack.c.l.b16 %v1602
    %v1759 = vunpack.c.h.b16 %v1602
    %v1760 = vunpack.c.l.b16 %v1603
    %v1761 = vunpack.c.h.b16 %v1603
    %v1762 = vunpack.c.l.b16 %v1604
    %v1763 = vunpack.c.h.b16 %v1604
    %v1764 = vunpack.c.l.b16 %v1605
    %v1765 = vunpack.c.h.b16 %v1605
    %v1766 = vunpack.c.l.b16 %v1606
    %v1767 = vunpack.c.h.b16 %v1606
    %v1768 = vunpack.c.l.b16 %v1607
    %v1769 = vunpack.c.h.b16 %v1607
    %v1770 = vunpack.c.l.b16 %v1608
    %v1771 = vunpack.c.h.b16 %v1608
    %v1772 = vunpack.c.l.b16 %v1609
    %v1773 = vunpack.c.h.b16 %v1609
    %v1774 = vunpack.c.l.b16 %v1610
    %v1775 = vunpack.c.h.b16 %v1610
    %v1776 = vunpack.c.l.b16 %v1611
    %v1777 = vunpack.c.h.b16 %v1611
    %v1778 = vunpack.c.l.b16 %v1612
    %v1779 = vunpack.c.h.b16 %v1612
    %v1780 = vunpack.c.l.b16 %v1613
    %v1781 = vunpack.c.h.b16 %v1613
    %v1782 = vunpack.c.l.b16 %v1614
    %v1783 = vunpack.c.h.b16 %v1614
    %v1784 = vunpack.c.l.b16 %v1615
    %v1785 = vunpack.c.h.b16 %v1615
    %v1786 = vunpack.c.l.b16 %v1616
    %v1787 = vunpack.c.h.b16 %v1616
    %v1788 = vunpack.c.l.b16 %v1617
    %v1789 = vunpack.c.h.b16 %v1617
    %v1790 = vunpack.c.l.b16 %v1618
    %v1791 = vunpack.c.h.b16 %v1618
    %v1792 = vunpack.c.l.b16 %v1619
    %v1793 = vunpack.c.h.b16 %v1619
    %v1794 = vunpack.c.l.b16 %v1620
    %v1795 = vunpack.c.h.b16 %v1620
    %v1796 = vunpack.c.l.b16 %v1621
    %v1797 = vunpack.c.h.b16 %v1621
    %v1798 = vunpack.c.l.b16 %v1622
    %v1799 = vunpack.c.h.b16 %v1622
    %v1800 = vunpack.c.l.b16 %v1623
    %v1801 = vunpack.c.h.b16 %v1623
    %v1802 = vunpack.c.l.b16 %v1624
    %v1803 = vunpack.c.h.b16 %v1624
    %v1804 = vunpack.c.l.b16 %v1625
    %v1805 = vunpack.c.h.b16 %v1625
    %v1806 = vunpack.c.l.b16 %v1626
    %v1807 = vunpack.c.h.b16 %v1626
    %v1808 = vunpack.c.l.b16 %v1627
    %v1809 = vunpack.c.h.b16 %v1627
    %v1810 = vunpack.c.l.b16 %v1628
    %v1811 = vunpack.c.h.b16 %v1628
    %v1812 = vunpack.c.l.b16 %v1629
    %v1813 = vunpack.c.h.b16 %v1629
    %v1814 = vunpack.c.l.b16 %v1630
    %v1815 = vunpack.c.h.b16 %v1630
    %v1816 = vunpack.c.l.b16 %v1631
    %v1817 = vunpack.c.h.b16 %v1631
    %v1818 = vunpack.c.l.b16 %v1632
    %v1819 = vunpack.c.h.b16 %v1632
    %v1820 = vunpack.c.l.b16 %v1633
    %v1821 = vunpack.c.h.b16 %v1633
    %v1822 = vunpack.c.l.b16 %v1634
    %v1823 = vunpack.c.h.b16 %v1634
    %v1824 = vunpack.c.l.b16 %v1635
    %v1825 = vunpack.c.h.b16 %v1635
    %v1826 = vunpack.c.l.b16 %v1636
    %v1827 = vunpack.c.h.b16 %v1636
    %v1828 = vunpack.c.l.b16 %v1637
    %v1829 = vunpack.c.h.b16 %v1637
    %v1830 = vunpack.c.l.b16 %v1638
    %v1831 = vunpack.c.h.b16 %v1638
    %v1832 = vunpack.c.l.b16 %v1639
    %v1833 = vunpack.c.h.b16 %v1639
    %v1834 = vunpack.c.l.b16 %v1640
    %v1835 = vunpack.c.h.b16 %v1640
    %v1836 = vunpack.c.l.b16 %v1641
    %v1837 = vunpack.c.h.b16 %v1641
    %v1838 = vunpack.c.l.b16 %v1642
    %v1839 = vunpack.c.h.b16 %v1642
    %v1840 = vunpack.c.l.b16 %v1643
    %v1841 = vunpack.c.h.b16 %v1643
    %v1842 = vunpack.c.l.b16 %v1644
    %v1843 = vunpack.c.h.b16 %v1644
    %v1844 = vunpack.c.l.b16 %v1645
    %v1845 = vunpack.c.h.b16 %v1645
    %v1846 = vunpack.c.l.b16 %v1646
    %v1847 = vunpack.c.h.b16 %v1646
    %v1848 = vunpack.c.l.b16 %v1647
    %v1849 = vunpack.c.h.b16 %v1647
    %v1850 = vunpack.c.l.b16 %v1648
    %v1851 = vunpack.c.h.b16 %v1648
    %v1852 = vunpack.c.l.b16 %v1649
    %v1853 = vunpack.c.h.b16 %v1649
    %v1854 = vunpack.c.l.b16 %v1650
    %v1855 = vunpack.c.h.b16 %v1650
    %v1856 = vunpack.c.l.b16 %v1651
    %v1857 = vunpack.c.h.b16 %v1651
    %v1858 = vunpack.c.l.b16 %v1652
    %v1859 = vunpack.c.h.b16 %v1652
    %v1860 = vunpack.c.l.b16 %v1653
    %v1861 = vunpack.c.h.b16 %v1653
    %v1862 = vunpack.c.l.b16 %v1654
    %v1863 = vunpack.c.h.b16 %v1654
    %v1864 = vpack.c.b16 %v1738, %v1736
    %v1865 = vpack.c.b16 %v1739, %v1737
    %v1866 = vpack.c.b16 %v1742, %v1740
    %v1867 = vpack.c.b16 %v1743, %v1741
    %v1868 = vpack.c.b16 %v1746, %v1744
    %v1869 = vpack.c.b16 %v1747, %v1745
    %v1870 = vpack.c.b16 %v1750, %v1748
    %v1871 = vpack.c.b16 %v1751, %v1749
    %v1872 = vpack.c.b16 %v1754, %v1752
    %v1873 = vpack.c.b16 %v1755, %v1753
    %v1874 = vpack.c.b16 %v1758, %v1756
    %v1875 = vpack.c.b16 %v1759, %v1757
    %v1876 = vpack.c.b16 %v1762, %v1760
    %v1877 = vpack.c.b16 %v1763, %v1761
    %v1878 = vpack.c.b16 %v1766, %v1764
    %v1879 = vpack.c.b16 %v1767, %v1765
    %v1880 = vpack.c.b16 %v1770, %v1768
    %v1881 = vpack.c.b16 %v1771, %v1769
    %v1882 = vpack.c.b16 %v1774, %v1772
    %v1883 = vpack.c.b16 %v1775, %v1773
    %v1884 = vpack.c.b16 %v1778, %v1776
    %v1885 = vpack.c.b16 %v1779, %v1777
    %v1886 = vpack.c.b16 %v1782, %v1780
    %v1887 = vpack.c.b16 %v1783, %v1781
    %v1888 = vpack.c.b16 %v1786, %v1784
    %v1889 = vpack.c.b16 %v1787, %v1785
    %v1890 = vpack.c.b16 %v1790, %v1788
    %v1891 = vpack.c.b16 %v1791, %v1789
    %v1892 = vpack.c.b16 %v1794, %v1792
    %v1893 = vpack.c.b16 %v1795, %v1793
    %v1894 = vpack.c.b16 %v1798, %v1796
    %v1895 = vpack.c.b16 %v1799, %v1797
    %v1896 = vpack.c.b16 %v1802, %v1800
    %v1897 = vpack.c.b16 %v1803, %v1801
    %v1898 = vpack.c.b16 %v1806, %v1804
    %v1899 = vpack.c.b16 %v1807, %v1805
    %v1900 = vpack.c.b16 %v1810, %v1808
    %v1901 = vpack.c.b16 %v1811, %v1809
    %v1902 = vpack.c.b16 %v1814, %v1812
    %v1903 = vpack.c.b16 %v1815, %v1813
    %v1904 = vpack.c.b16 %v1818, %v1816
    %v1905 = vpack.c.b16 %v1819, %v1817
    %v1906 = vpack.c.b16 %v1822, %v1820
    %v1907 = vpack.c.b16 %v1823, %v1821
    %v1908 = vpack.c.b16 %v1826, %v1824
    %v1909 = vpack.c.b16 %v1827, %v1825
    %v1910 = vpack.c.b16 %v1830, %v1828
    %v1911 = vpack.c.b16 %v1831, %v1829
    %v1912 = vpack.c.b16 %v1834, %v1832
    %v1913 = vpack.c.b16 %v1835, %v1833
    %v1914 = vpack.c.b16 %v1838, %v1836
    %v1915 = vpack.c.b16 %v1839, %v1837
    %v1916 = vpack.c.b16 %v1842, %v1840
    %v1917 = vpack.c.b16 %v1843, %v1841
    %v1918 = vpack.c.b16 %v1846, %v1844
    %v1919 = vpack.c.b16 %v1847, %v1845
    %v1920 = vpack.c.b16 %v1850, %v1848
    %v1921 = vpack.c.b16 %v1851, %v1849
    %v1922 = vpack.c.b16 %v1854, %v1852
    %v1923 = vpack.c.b16 %v1855, %v1853
    %v1924 = vpack.c.b16 %v1858, %v1856
    %v1925 = vpack.c.b16 %v1859, %v1857
    %v1926 = vpack.c.b16 %v1862, %v1860
    %v1927 = vpack.c.b16 %v1863, %v1861
    %1992 = vmatprep.subr.bf16.mxu0 %v1865
    %1993 = vmatpush1.bf16.msra.mxu0 %v1864
    %1994 = vmatprep.subr.bf16.mxu0 %v1867
    %1995 = vmatpush1.bf16.msra.mxu0 %v1866
    %1996 = vmatprep.subr.bf16.mxu0 %v1869
    %1997 = vmatpush1.bf16.msra.mxu0 %v1868
    %1998 = vmatprep.subr.bf16.mxu0 %v1871
    %1999 = vmatpush1.bf16.msra.mxu0 %v1870
    %2000 = vmatprep.subr.bf16.mxu0 %v1873
    %2001 = vmatpush1.bf16.msra.mxu0 %v1872
    %2002 = vmatprep.subr.bf16.mxu0 %v1875
    %2003 = vmatpush1.bf16.msra.mxu0 %v1874
    %2004 = vmatprep.subr.bf16.mxu0 %v1877
    %2005 = vmatpush1.bf16.msra.mxu0 %v1876
    %2006 = vmatprep.subr.bf16.mxu0 %v1879
    %2007 = vmatpush1.bf16.msra.mxu0 %v1878
    %2008 = vmatprep.subr.bf16.mxu0 %v1881
    %2009 = vmatpush1.bf16.msra.mxu0 %v1880
    %2010 = vmatprep.subr.bf16.mxu0 %v1883
    %2011 = vmatpush1.bf16.msra.mxu0 %v1882
    %2012 = vmatprep.subr.bf16.mxu0 %v1885
    %2013 = vmatpush1.bf16.msra.mxu0 %v1884
    %2014 = vmatprep.subr.bf16.mxu0 %v1887
    %2015 = vmatpush1.bf16.msra.mxu0 %v1886
    %2016 = vmatprep.subr.bf16.mxu0 %v1889
    %2017 = vmatpush1.bf16.msra.mxu0 %v1888
    %2018 = vmatprep.subr.bf16.mxu0 %v1891
    %2019 = vmatpush1.bf16.msra.mxu0 %v1890
    %2020 = vmatprep.subr.bf16.mxu0 %v1893
    %2021 = vmatpush1.bf16.msra.mxu0 %v1892
    %2022 = vmatprep.subr.bf16.mxu0 %v1895
    %2023 = vmatpush1.bf16.msra.mxu0 %v1894
    %2024 = vmatprep.mubr.bf16.mxu0 %v1656
    %2025 = vmatmul.mubr.bf16.gmra.mrb[0].mxu0 %v1655
    %v2026 = vpop.f32.mrb[0].mxu0
    %v2027 = vadd.f32 %v1665, %v2026
    %v2028 = vpop.f32.mrb[0].mxu0
    %v2029 = vadd.f32 %v1669, %v2028
    %v2030 = vpop.f32.mrb[0].mxu0
    %v2031 = vadd.f32 %v1665, %v2030
    %v2032 = vpop.f32.mrb[0].mxu0
    %v2033 = vadd.f32 %v1669, %v2032
    %2034 = vdwg.mxu0
    %2035 = vmatprep.subr.bf16.mxu0 %v1897
    %2036 = vmatpush1.bf16.msra.mxu0 %v1896
    %2037 = vmatprep.subr.bf16.mxu0 %v1899
    %2038 = vmatpush1.bf16.msra.mxu0 %v1898
    %2039 = vmatprep.subr.bf16.mxu0 %v1901
    %2040 = vmatpush1.bf16.msra.mxu0 %v1900
    %2041 = vmatprep.subr.bf16.mxu0 %v1903
    %2042 = vmatpush1.bf16.msra.mxu0 %v1902
    %2043 = vmatprep.subr.bf16.mxu0 %v1905
    %2044 = vmatpush1.bf16.msra.mxu0 %v1904
    %2045 = vmatprep.subr.bf16.mxu0 %v1907
    %2046 = vmatpush1.bf16.msra.mxu0 %v1906
    %2047 = vmatprep.subr.bf16.mxu0 %v1909
    %2048 = vmatpush1.bf16.msra.mxu0 %v1908
    %2049 = vmatprep.subr.bf16.mxu0 %v1911
    %2050 = vmatpush1.bf16.msra.mxu0 %v1910
    %2051 = vmatprep.subr.bf16.mxu0 %v1913
    %2052 = vmatpush1.bf16.msra.mxu0 %v1912
    %2053 = vmatprep.subr.bf16.mxu0 %v1915
    %2054 = vmatpush1.bf16.msra.mxu0 %v1914
    %2055 = vmatprep.subr.bf16.mxu0 %v1917
    %2056 = vmatpush1.bf16.msra.mxu0 %v1916
    %2057 = vmatprep.subr.bf16.mxu0 %v1919
    %2058 = vmatpush1.bf16.msra.mxu0 %v1918
    %2059 = vmatprep.subr.bf16.mxu0 %v1921
    %2060 = vmatpush1.bf16.msra.mxu0 %v1920
    %2061 = vmatprep.subr.bf16.mxu0 %v1923
    %2062 = vmatpush1.bf16.msra.mxu0 %v1922
    %2063 = vmatprep.subr.bf16.mxu0 %v1925
    %2064 = vmatpush1.bf16.msra.mxu0 %v1924
    %2065 = vmatprep.subr.bf16.mxu0 %v1927
    %2066 = vmatpush1.bf16.msra.mxu0 %v1926
    %2067 = vmatprep.mubr.bf16.mxu0 %v1658
    %2068 = vmatmul.mubr.bf16.gmra.mrb[0].mxu0 %v1657
    %v2069 = vpop.f32.mrb[0].mxu0
    %v2070 = vadd.f32 %v2027, %v2069
    %v2071 = vpop.f32.mrb[0].mxu0
    %v2072 = vadd.f32 %v2029, %v2071
    %v2073 = vpop.f32.mrb[0].mxu0
    %v2074 = vadd.f32 %v2031, %v2073
    %v2075 = vpop.f32.mrb[0].mxu0
    %v2076 = vadd.f32 %v2033, %v2075
    %2077 = vdwg.mxu0
    %v2078 = vmax.f32 %v2070, 0.0
    %v2079 = vmax.f32 %v2072, 0.0
    %v2080 = vmax.f32 %v2074, 0.0
    %v2081 = vmax.f32 %v2076, 0.0
    %v2082 = vld [vmem:[%s5 + $0x10] sm:$0xf]
    %v2083 = vld [vmem:[%s5 + $0x24] sm:$0xf]
    %v2084 = vld [vmem:[%s5 + $0x38] sm:$0xf]
    %v2085 = vld [vmem:[%s5 + $0x4c] sm:$0xf]
    %v2086 = vld [vmem:[%s5 + $0x60] sm:$0xf]
    %v2087 = vld [vmem:[%s5 + $0x74] sm:$0xf]
    %v2088 = vld [vmem:[%s5 + $0x88] sm:$0xf]
    %v2089 = vld [vmem:[%s5 + $0x9c] sm:$0xf]
    %v2090 = vld [vmem:[%s5 + $0xb0] sm:$0xf]
    %v2091 = vld [vmem:[%s5 + $0xc4] sm:$0xf]
    %v2092 = vld [vmem:[%s5 + $0xd8] sm:$0xf]
    %v2093 = vld [vmem:[%s5 + $0xec] sm:$0xf]
    %v2094 = vld [vmem:[%s5 + $0x100] sm:$0xf]
    %v2095 = vld [vmem:[%s5 + $0x114] sm:$0xf]
    %v2096 = vld [vmem:[%s5 + $0x128] sm:$0xf]
    %v2097 = vld [vmem:[%s5 + $0x13c] sm:$0xf]
    %v2098 = vld [vmem:[%s5 + $0x150] sm:$0xf]
    %v2099 = vld [vmem:[%s5 + $0x164] sm:$0xf]
    %v2100 = vld [vmem:[%s5 + $0x178] sm:$0xf]
    %v2101 = vld [vmem:[%s5 + $0x18c] sm:$0xf]
    %v2102 = vld [vmem:[%s5 + $0x1a0] sm:$0xf]
    %v2103 = vld [vmem:[%s5 + $0x1b4] sm:$0xf]
    %v2104 = vld [vmem:[%s5 + $0x1c8] sm:$0xf]
    %v2105 = vld [vmem:[%s5 + $0x1dc] sm:$0xf]
    %v2106 = vld [vmem:[%s5 + $0x1f0] sm:$0xf]
    %v2107 = vld [vmem:[%s5 + $0x204] sm:$0xf]
    %v2108 = vld [vmem:[%s5 + $0x218] sm:$0xf]
    %v2109 = vld [vmem:[%s5 + $0x22c] sm:$0xf]
    %v2110 = vld [vmem:[%s5 + $0x240] sm:$0xf]
    %v2111 = vld [vmem:[%s5 + $0x254] sm:$0xf]
    %v2112 = vld [vmem:[%s5 + $0x268] sm:$0xf]
    %v2113 = vld [vmem:[%s5 + $0x27c] sm:$0xf]
    %v2114 = vpack.c.bf16 %v2080, %v2078
    %v2115 = vpack.c.bf16 %v2081, %v2079
    %v2116 = vld [vmem:[%s7 + $0x6] ss:$0 sm:$0xff]
    %v2149 = vunpack.c.l.b16 %v2082
    %v2150 = vunpack.c.l.b16 %v2083
    %v2151 = vunpack.c.l.b16 %v2084
    %v2152 = vunpack.c.l.b16 %v2085
    %v2153 = vunpack.c.l.b16 %v2086
    %v2154 = vunpack.c.l.b16 %v2087
    %v2155 = vunpack.c.l.b16 %v2088
    %v2156 = vunpack.c.l.b16 %v2089
    %v2157 = vunpack.c.l.b16 %v2090
    %v2158 = vunpack.c.l.b16 %v2091
    %v2159 = vunpack.c.l.b16 %v2092
    %v2160 = vunpack.c.l.b16 %v2093
    %v2161 = vunpack.c.l.b16 %v2094
    %v2162 = vunpack.c.l.b16 %v2095
    %v2163 = vunpack.c.l.b16 %v2096
    %v2164 = vunpack.c.l.b16 %v2097
    %v2165 = vunpack.c.l.b16 %v2098
    %v2166 = vunpack.c.l.b16 %v2099
    %v2167 = vunpack.c.l.b16 %v2100
    %v2168 = vunpack.c.l.b16 %v2101
    %v2169 = vunpack.c.l.b16 %v2102
    %v2170 = vunpack.c.l.b16 %v2103
    %v2171 = vunpack.c.l.b16 %v2104
    %v2172 = vunpack.c.l.b16 %v2105
    %v2173 = vunpack.c.l.b16 %v2106
    %v2174 = vunpack.c.l.b16 %v2107
    %v2175 = vunpack.c.l.b16 %v2108
    %v2176 = vunpack.c.l.b16 %v2109
    %v2177 = vunpack.c.l.b16 %v2110
    %v2178 = vunpack.c.l.b16 %v2111
    %v2179 = vunpack.c.l.b16 %v2112
    %v2180 = vunpack.c.l.b16 %v2113
    %v2181 = vpack.c.b16 %v2150, %v2149
    %v2182 = vpack.c.b16 %v2152, %v2151
    %v2183 = vpack.c.b16 %v2154, %v2153
    %v2184 = vpack.c.b16 %v2156, %v2155
    %v2185 = vpack.c.b16 %v2158, %v2157
    %v2186 = vpack.c.b16 %v2160, %v2159
    %v2187 = vpack.c.b16 %v2162, %v2161
    %v2188 = vpack.c.b16 %v2164, %v2163
    %v2189 = vpack.c.b16 %v2166, %v2165
    %v2190 = vpack.c.b16 %v2168, %v2167
    %v2191 = vpack.c.b16 %v2170, %v2169
    %v2192 = vpack.c.b16 %v2172, %v2171
    %v2193 = vpack.c.b16 %v2174, %v2173
    %v2194 = vpack.c.b16 %v2176, %v2175
    %v2195 = vpack.c.b16 %v2178, %v2177
    %v2196 = vpack.c.b16 %v2180, %v2179
    %2213 = vmatprep.subr.bf16.mxu0 0
    %2214 = vmatpush1.bf16.msra.mxu0 %v2181
    %2215 = vmatprep.subr.bf16.mxu0 0
    %2216 = vmatpush1.bf16.msra.mxu0 %v2182
    %2217 = vmatprep.subr.bf16.mxu0 0
    %2218 = vmatpush1.bf16.msra.mxu0 %v2183
    %2219 = vmatprep.subr.bf16.mxu0 0
    %2220 = vmatpush1.bf16.msra.mxu0 %v2184
    %2221 = vmatprep.subr.bf16.mxu0 0
    %2222 = vmatpush1.bf16.msra.mxu0 %v2185
    %2223 = vmatprep.subr.bf16.mxu0 0
    %2224 = vmatpush1.bf16.msra.mxu0 %v2186
    %2225 = vmatprep.subr.bf16.mxu0 0
    %2226 = vmatpush1.bf16.msra.mxu0 %v2187
    %2227 = vmatprep.subr.bf16.mxu0 0
    %2228 = vmatpush1.bf16.msra.mxu0 %v2188
    %2229 = vmatprep.subr.bf16.mxu0 0
    %2230 = vmatpush1.bf16.msra.mxu0 %v2189
    %2231 = vmatprep.subr.bf16.mxu0 0
    %2232 = vmatpush1.bf16.msra.mxu0 %v2190
    %2233 = vmatprep.subr.bf16.mxu0 0
    %2234 = vmatpush1.bf16.msra.mxu0 %v2191
    %2235 = vmatprep.subr.bf16.mxu0 0
    %2236 = vmatpush1.bf16.msra.mxu0 %v2192
    %2237 = vmatprep.subr.bf16.mxu0 0
    %2238 = vmatpush1.bf16.msra.mxu0 %v2193
    %2239 = vmatprep.subr.bf16.mxu0 0
    %2240 = vmatpush1.bf16.msra.mxu0 %v2194
    %2241 = vmatprep.subr.bf16.mxu0 0
    %2242 = vmatpush1.bf16.msra.mxu0 %v2195
    %2243 = vmatprep.subr.bf16.mxu0 0
    %2244 = vmatpush1.bf16.msra.mxu0 %v2196
    %2245 = vmatprep.mubr.bf16.mxu0 %v2115
    %2246 = vmatmul.mubr.bf16.gmra.mrb[0].mxu0 %v2114
    %v2247 = vpop.f32.mrb[0].mxu0
    %v2248 = vadd.f32 %v2116, %v2247
    %v2249 = vpop.f32.mrb[0].mxu0
    %v2250 = vpop.f32.mrb[0].mxu0
    %v2251 = vadd.f32 %v2116, %v2250
    %v2252 = vpop.f32.mrb[0].mxu0
    %2253 = vdwg.mxu0
    %v2254 = vmax.f32 %v2248, 0.0
    %v2255 = vmax.f32 %v2251, 0.0
    %v2256 = vld [vmem:[%s3 + $0x4] sm:$0xf]
    %v2257 = vld [vmem:[%s3 + $0x10] sm:$0xf]
    %v2258 = vld [vmem:[%s3 + $0x1c] sm:$0xf]
    %v2259 = vld [vmem:[%s3 + $0x28] sm:$0xf]
    %v2260 = vld [vmem:[%s3 + $0x34] sm:$0xf]
    %v2261 = vld [vmem:[%s3 + $0x40] sm:$0xf]
    %v2262 = vld [vmem:[%s3 + $0x4c] sm:$0xf]
    %v2263 = vld [vmem:[%s3 + $0x58] sm:$0xf]
    %v2264 = vpack.c.bf16 %v2255, %v2254
    %v2265 = vld [vmem:[%s7 + $0x7] ss:$0 sm:$0xff]
    %v2274 = vunpack.c.l.b16 %v2256
    %v2275 = vunpack.c.l.b16 %v2257
    %v2276 = vunpack.c.l.b16 %v2258
    %v2277 = vunpack.c.l.b16 %v2259
    %v2278 = vunpack.c.l.b16 %v2260
    %v2279 = vunpack.c.l.b16 %v2261
    %v2280 = vunpack.c.l.b16 %v2262
    %v2281 = vunpack.c.l.b16 %v2263
    %v2282 = vpack.c.b16 %v2275, %v2274
    %v2283 = vpack.c.b16 %v2277, %v2276
    %v2284 = vpack.c.b16 %v2279, %v2278
    %v2285 = vpack.c.b16 %v2281, %v2280
    %v2291 = vsel %vm884, %v2264, 0
    %2293 = vmatprep.subr.bf16.mxu0 0
    %2294 = vmatpush1.bf16.msra.mxu0 %v2282
    %2295 = vmatprep.subr.bf16.mxu0 0
    %2296 = vmatpush1.bf16.msra.mxu0 %v2283
    %2297 = vmatprep.subr.bf16.mxu0 0
    %2298 = vmatpush1.bf16.msra.mxu0 %v2284
    %2299 = vmatprep.subr.bf16.mxu0 0
    %2300 = vmatpush1.bf16.msra.mxu0 %v2285
    %2301 = vmatprep.subr.bf16.mxu0 0
    %2302 = vmatpush1.bf16.msra.mxu0 0
    %2303 = vmatprep.subr.bf16.mxu0 0
    %2304 = vmatpush1.bf16.msra.mxu0 0
    %2305 = vmatprep.subr.bf16.mxu0 0
    %2306 = vmatpush1.bf16.msra.mxu0 0
    %2307 = vmatprep.subr.bf16.mxu0 0
    %2308 = vmatpush1.bf16.msra.mxu0 0
    %2309 = vmatprep.subr.bf16.mxu0 0
    %2310 = vmatpush1.bf16.msra.mxu0 0
    %2311 = vmatprep.subr.bf16.mxu0 0
    %2312 = vmatpush1.bf16.msra.mxu0 0
    %2313 = vmatprep.subr.bf16.mxu0 0
    %2314 = vmatpush1.bf16.msra.mxu0 0
    %2315 = vmatprep.subr.bf16.mxu0 0
    %2316 = vmatpush1.bf16.msra.mxu0 0
    %2317 = vmatprep.subr.bf16.mxu0 0
    %2318 = vmatpush1.bf16.msra.mxu0 0
    %2319 = vmatprep.subr.bf16.mxu0 0
    %2320 = vmatpush1.bf16.msra.mxu0 0
    %2321 = vmatprep.subr.bf16.mxu0 0
    %2322 = vmatpush1.bf16.msra.mxu0 0
    %2323 = vmatprep.subr.bf16.mxu0 0
    %2324 = vmatpush1.bf16.msra.mxu0 0
    %2325 = vmatprep.mubr.bf16.mxu0 0
    %2326 = vmatmul.mubr.bf16.gmra.mrb[0].mxu0 %v2291
    %v2327 = vpop.f32.mrb[0].mxu0
    %v2328 = vadd.f32 %v2265, %v2327
    %v2329 = vpop.f32.mrb[0].mxu0
    %v2330 = vpop.f32.mrb[0].mxu0
    %v2331 = vadd.f32 %v2265, %v2330
    %v2332 = vpop.f32.mrb[0].mxu0
    %2333 = vdwg.mxu0
    %v2334 = vmax.f32 %v2328, 0.0
    %v2335 = vmax.f32 %v2331, 0.0
    %v2336 = vld [vmem:[%s3 + $0x8] sm:$0xf]
    %v2337 = vld [vmem:[%s3 + $0x14] sm:$0xf]
    %v2338 = vld [vmem:[%s3 + $0x20] sm:$0xf]
    %v2339 = vld [vmem:[%s3 + $0x2c] sm:$0xf]
    %v2340 = vld [vmem:[%s3 + $0x38] sm:$0xf]
    %v2341 = vld [vmem:[%s3 + $0x44] sm:$0xf]
    %v2342 = vld [vmem:[%s3 + $0x50] sm:$0xf]
    %v2343 = vld [vmem:[%s3 + $0x5c] sm:$0xf]
    %v2344 = vpack.c.bf16 %v2335, %v2334
    %v2345 = vld [vmem:[%s7 + $0x20] ss:$0 sm:$0xff]
    %v2354 = vunpack.c.l.b16 %v2336
    %v2355 = vunpack.c.l.b16 %v2337
    %v2356 = vunpack.c.l.b16 %v2338
    %v2357 = vunpack.c.l.b16 %v2339
    %v2358 = vunpack.c.l.b16 %v2340
    %v2359 = vunpack.c.l.b16 %v2341
    %v2360 = vunpack.c.l.b16 %v2342
    %v2361 = vunpack.c.l.b16 %v2343
    %v2362 = vpack.c.b16 %v2355, %v2354
    %v2363 = vpack.c.b16 %v2357, %v2356
    %v2364 = vpack.c.b16 %v2359, %v2358
    %v2365 = vpack.c.b16 %v2361, %v2360
    %v2371 = vsel %vm884, %v2344, 0
    %2373 = vmatprep.subr.bf16.mxu0 0
    %2374 = vmatpush1.bf16.msra.mxu0 %v2362
    %2375 = vmatprep.subr.bf16.mxu0 0
    %2376 = vmatpush1.bf16.msra.mxu0 %v2363
    %2377 = vmatprep.subr.bf16.mxu0 0
    %2378 = vmatpush1.bf16.msra.mxu0 %v2364
    %2379 = vmatprep.subr.bf16.mxu0 0
    %2380 = vmatpush1.bf16.msra.mxu0 %v2365
    %2381 = vmatprep.subr.bf16.mxu0 0
    %2382 = vmatpush1.bf16.msra.mxu0 0
    %2383 = vmatprep.subr.bf16.mxu0 0
    %2384 = vmatpush1.bf16.msra.mxu0 0
    %2385 = vmatprep.subr.bf16.mxu0 0
    %2386 = vmatpush1.bf16.msra.mxu0 0
    %2387 = vmatprep.subr.bf16.mxu0 0
    %2388 = vmatpush1.bf16.msra.mxu0 0
    %2389 = vmatprep.subr.bf16.mxu0 0
    %2390 = vmatpush1.bf16.msra.mxu0 0
    %2391 = vmatprep.subr.bf16.mxu0 0
    %2392 = vmatpush1.bf16.msra.mxu0 0
    %2393 = vmatprep.subr.bf16.mxu0 0
    %2394 = vmatpush1.bf16.msra.mxu0 0
    %2395 = vmatprep.subr.bf16.mxu0 0
    %2396 = vmatpush1.bf16.msra.mxu0 0
    %2397 = vmatprep.subr.bf16.mxu0 0
    %2398 = vmatpush1.bf16.msra.mxu0 0
    %2399 = vmatprep.subr.bf16.mxu0 0
    %2400 = vmatpush1.bf16.msra.mxu0 0
    %2401 = vmatprep.subr.bf16.mxu0 0
    %2402 = vmatpush1.bf16.msra.mxu0 0
    %2403 = vmatprep.subr.bf16.mxu0 0
    %2404 = vmatpush1.bf16.msra.mxu0 0
    %2405 = vmatprep.mubr.bf16.mxu0 0
    %2406 = vmatmul.mubr.bf16.gmra.mrb[0].mxu0 %v2371
    %v2407 = vpop.f32.mrb[0].mxu0
    %v2408 = vadd.f32 %v2345, %v2407
    %v2409 = vpop.f32.mrb[0].mxu0
    %v2410 = vpop.f32.mrb[0].mxu0
    %v2411 = vadd.f32 %v2345, %v2410
    %v2412 = vpop.f32.mrb[0].mxu0
    %2413 = vdwg.mxu0
    %v2414 = vmax.f32 %v2408, 0.0
    %v2415 = vmax.f32 %v2411, 0.0
    %v2416 = vld [vmem:[%s4 + $0x8] sm:$0xf]
    %v2417 = vld [vmem:[%s4 + $0x14] sm:$0xf]
    %v2418 = vld [vmem:[%s4 + $0x20] sm:$0xf]
    %v2419 = vld [vmem:[%s4 + $0x2c] sm:$0xf]
    %v2420 = vld [vmem:[%s4 + $0x38] sm:$0xf]
    %v2421 = vld [vmem:[%s4 + $0x44] sm:$0xf]
    %v2422 = vld [vmem:[%s4 + $0x50] sm:$0xf]
    %v2423 = vld [vmem:[%s4 + $0x5c] sm:$0xf]
    %v2424 = vld [vmem:[%s4 + $0x68] sm:$0xf]
    %v2425 = vld [vmem:[%s4 + $0x74] sm:$0xf]
    %v2426 = vld [vmem:[%s4 + $0x80] sm:$0xf]
    %v2427 = vld [vmem:[%s4 + $0x8c] sm:$0xf]
    %v2428 = vld [vmem:[%s4 + $0x98] sm:$0xf]
    %v2429 = vld [vmem:[%s4 + $0xa4] sm:$0xf]
    %v2430 = vld [vmem:[%s4 + $0xb0] sm:$0xf]
    %v2431 = vld [vmem:[%s4 + $0xbc] sm:$0xf]
    %v2432 = vpack.c.bf16 %v2415, %v2414
    %v2433 = vld [vmem:[%s7 + $0x21] ss:$0 sm:$0xff]
    %v2450 = vunpack.c.l.b16 %v2416
    %v2451 = vunpack.c.l.b16 %v2417
    %v2452 = vunpack.c.l.b16 %v2418
    %v2453 = vunpack.c.l.b16 %v2419
    %v2454 = vunpack.c.l.b16 %v2420
    %v2455 = vunpack.c.l.b16 %v2421
    %v2456 = vunpack.c.l.b16 %v2422
    %v2457 = vunpack.c.l.b16 %v2423
    %v2458 = vunpack.c.l.b16 %v2424
    %v2459 = vunpack.c.l.b16 %v2425
    %v2460 = vunpack.c.l.b16 %v2426
    %v2461 = vunpack.c.l.b16 %v2427
    %v2462 = vunpack.c.l.b16 %v2428
    %v2463 = vunpack.c.l.b16 %v2429
    %v2464 = vunpack.c.l.b16 %v2430
    %v2465 = vunpack.c.l.b16 %v2431
    %v2466 = vpack.c.b16 %v2451, %v2450
    %v2467 = vpack.c.b16 %v2453, %v2452
    %v2468 = vpack.c.b16 %v2455, %v2454
    %v2469 = vpack.c.b16 %v2457, %v2456
    %v2470 = vpack.c.b16 %v2459, %v2458
    %v2471 = vpack.c.b16 %v2461, %v2460
    %v2472 = vpack.c.b16 %v2463, %v2462
    %v2473 = vpack.c.b16 %v2465, %v2464
    %2482 = vmatprep.subr.bf16.mxu0 0
    %2483 = vmatpush1.bf16.msra.mxu0 %v2466
    %2484 = vmatprep.subr.bf16.mxu0 0
    %2485 = vmatpush1.bf16.msra.mxu0 %v2467
    %2486 = vmatprep.subr.bf16.mxu0 0
    %2487 = vmatpush1.bf16.msra.mxu0 %v2468
    %2488 = vmatprep.subr.bf16.mxu0 0
    %2489 = vmatpush1.bf16.msra.mxu0 %v2469
    %2490 = vmatprep.subr.bf16.mxu0 0
    %2491 = vmatpush1.bf16.msra.mxu0 %v2470
    %2492 = vmatprep.subr.bf16.mxu0 0
    %2493 = vmatpush1.bf16.msra.mxu0 %v2471
    %2494 = vmatprep.subr.bf16.mxu0 0
    %2495 = vmatpush1.bf16.msra.mxu0 %v2472
    %2496 = vmatprep.subr.bf16.mxu0 0
    %2497 = vmatpush1.bf16.msra.mxu0 %v2473
    %2498 = vmatprep.subr.bf16.mxu0 0
    %2499 = vmatpush1.bf16.msra.mxu0 0
    %2500 = vmatprep.subr.bf16.mxu0 0
    %2501 = vmatpush1.bf16.msra.mxu0 0
    %2502 = vmatprep.subr.bf16.mxu0 0
    %2503 = vmatpush1.bf16.msra.mxu0 0
    %2504 = vmatprep.subr.bf16.mxu0 0
    %2505 = vmatpush1.bf16.msra.mxu0 0
    %2506 = vmatprep.subr.bf16.mxu0 0
    %2507 = vmatpush1.bf16.msra.mxu0 0
    %2508 = vmatprep.subr.bf16.mxu0 0
    %2509 = vmatpush1.bf16.msra.mxu0 0
    %2510 = vmatprep.subr.bf16.mxu0 0
    %2511 = vmatpush1.bf16.msra.mxu0 0
    %2512 = vmatprep.subr.bf16.mxu0 0
    %2513 = vmatpush1.bf16.msra.mxu0 0
    %2514 = vmatprep.mubr.bf16.mxu0 0
    %2515 = vmatmul.mubr.bf16.gmra.mrb[0].mxu0 %v2432
    %v2516 = vpop.f32.mrb[0].mxu0
    %v2517 = vadd.f32 %v2433, %v2516
    %v2518 = vpop.f32.mrb[0].mxu0
    %v2519 = vpop.f32.mrb[0].mxu0
    %v2520 = vadd.f32 %v2433, %v2519
    %v2521 = vpop.f32.mrb[0].mxu0
    %2522 = vdwg.mxu0
    %2523 = vst [vmem:[%s8] sm:$0xff] %v2517
    %2524 = vst [vmem:[%s8 + $0x8] sm:$0xff] %v2520
    // Predicated region
    $region42: #{dueling_dqn_forward.1} parent=1 // pred_check
      _
    $region43: #{dueling_dqn_forward.1} parent=1 // pred_check_branch
      %2526 = sbr.rel (0) target = $region45
    $region44: #{dueling_dqn_forward.1} parent=1 // pred_region
      _
    $region45: #{dueling_dqn_forward.1} parent=1 // pred_fallthru
      _
    // Predicated region
    $region46: #{dueling_dqn_forward.1} parent=1 // pred_check
      _
    $region47: #{dueling_dqn_forward.1} parent=1 // pred_check_branch
      %2528 = sbr.rel (0) target = $region49
    $region48: #{dueling_dqn_forward.1} parent=1 // pred_region
      _
    $region49: #{dueling_dqn_forward.1} parent=1 // pred_fallthru
      _
    %2529 = vsyncpa [#allocation3], 1
    %2530 = vsyncpa [#allocation5], 1

</llo_original>
